<compile_context>
chip_gen: v6e
topology: v6e:2x2x1
jax: 0.10.0
libtpu: 0.0.40
codegen_flags: <defaults>
</compile_context>

<pallas_src>
import functools

import jax
import jax.numpy as jnp
from jax import lax
from jax.experimental import pallas as pl
from jax.experimental.pallas import tpu as pltpu


def _round_up(x, m):
    return ((x + m - 1) // m) * m


def _pad2d(a, rows, cols):
    r, c = a.shape
    if r == rows and c == cols:
        return a
    return jnp.zeros((rows, cols), a.dtype).at[:r, :c].set(a)


def _tpu_generation():
    try:
        kind = jax.devices()[0].device_kind.lower()
    except Exception:
        return "other"
    if "v5 lite" in kind or "v5lite" in kind or "v5e" in kind:
        return "v5e"
    if "v6" in kind:
        return "v6e"
    if "v7" in kind:
        return "v7x"
    return "other"


def _vmem_capacity_bytes(gen):
    try:
        return int(pltpu.get_tpu_info().vmem_capacity_bytes)
    except Exception:
        return (64 << 20) if gen == "v7x" else (128 << 20)


def _default_tiles(gen):
    if gen == "v7x":
        return 768, 256     # big row tile / small hidden slab -> 64 MiB/TC VMEM
    if gen == "v5e":
        return 256, 512     # 128-aligned is enough; already near v5e crossover
    return 512, 512         # v6e and default: fill the 2x256^2 MXU


def ffn_kernel(x_ref, w1_ref, b1_ref, w2_ref, b2_ref, o_ref, acc_ref,
               *, tn, precision):
    # x_ref : (tm, D_p)  row tile (compute dtype)
    # w1_ref: (D_p, tn)  hidden slab of W1
    # b1_ref: (1, H_p)   full b1, VMEM-resident (f32)
    # w2_ref: (tn, D_p)  hidden slab of W2
    # b2_ref: (1, D_p)   output bias (f32)
    # o_ref : (tm, D_p)  output tile (resident across hidden axis)
    # acc_ref: (tm, D_p) f32 accumulator scratch
    j = pl.program_id(1)

    @pl.when(j == 0)
    def _init():
        acc_ref[...] = jnp.zeros_like(acc_ref)

    # Slice the resident bias instead of DMAing a new (1, tn) slab per step.
    start = pl.multiple_of(j * tn, 128)
    b1_slab = b1_ref[:, pl.ds(start, tn)]

    # First matmul + bias + ReLU for this hidden slab (f32 acc on the MXU).
    h = jnp.dot(x_ref[...], w1_ref[...],
                preferred_element_type=jnp.float32, precision=precision)
    h = jnp.maximum(h + b1_slab, 0.0)

    # Partial second matmul: this slab's contribution to the output.
    acc_ref[...] += jnp.dot(h.astype(w2_ref.dtype), w2_ref[...],
                            preferred_element_type=jnp.float32,
                            precision=precision)

    # Output bias added once; single lane-dense writeback at the last step.
    @pl.when(j == pl.num_programs(1) - 1)
    def _finalize():
        o_ref[...] = (acc_ref[...] + b2_ref[...]).astype(o_ref.dtype)


def make_feed_forward(w1, b1, w2, b2, *, tile_m=None, tile_n=None,
                      compute_dtype=jnp.bfloat16, out_dtype=None):
    """Build a jitted FFN forward: y = ReLU(x @ W1 + b1) @ W2 + b2.

    Weights are stored pre-transposed as (in, out), matching y = x @ W.T + b of
    the PyTorch Linear layers. Dropout is identity (eval mode). Weight cast +
    padding happens once here, not per call.
    """
    gen = _tpu_generation()
    vmem_cap = _vmem_capacity_bytes(gen)
    def_tm, def_tn = _default_tiles(gen)
    tile_m = def_tm if tile_m is None else tile_m
    tile_n = def_tn if tile_n is None else tile_n
    two_cores = (gen == "v7x")

    d_model, hidden = w1.shape
    D_p = _round_up(d_model, 128)
    tn = _round_up(min(tile_n, _round_up(hidden, 128)), 128)
    H_p = _round_up(_round_up(hidden, 128), tn)

    # Hoisted one-time cast + pad of weights/biases (HBM->HBM, once).
    w1_p = _pad2d(w1.astype(compute_dtype), D_p, H_p)
    w2_p = _pad2d(w2.astype(compute_dtype), H_p, D_p)
    b1_p = _pad2d(b1.reshape(1, hidden).astype(jnp.float32), 1, H_p)
    b2_p = _pad2d(b2.reshape(1, d_model).astype(jnp.float32), 1, D_p)

    precision = (lax.Precision.HIGHEST if compute_dtype == jnp.float32
                 else lax.Precision.DEFAULT)

    def forward(x):
        lead_shape = x.shape[:-1]
        odt = x.dtype if out_dtype is None else out_dtype
        x2d = x.reshape(-1, d_model)
        M = x2d.shape[0]

        # Row tile: as big as requested, shrunk for tiny M, sublane-aligned.
        tm = _round_up(max(16, min(tile_m, _round_up(M, 16))), 16)
        M_p = _round_up(M, tm)
        # v7x: ensure the "parallel" row axis has >= 2 tiles so both TCs work.
        if two_cores and (M_p // tm) < 2 and M > 16:
            tm = _round_up(max(16, tm // 2), 16)
            M_p = _round_up(M, tm)

        x_p = _pad2d(x2d.astype(compute_dtype), M_p, D_p)
        grid = (M_p // tm, H_p // tn)
        row_tiles = grid[0]

        cbytes = jnp.dtype(compute_dtype).itemsize
        obytes = jnp.dtype(odt).itemsize
        tile_bytes = (
            2 * tm * D_p * cbytes        # x row tile, double-buffered
            + 2 * D_p * tn * cbytes      # W1 slab, double-buffered
            + 2 * tn * D_p * cbytes      # W2 slab, double-buffered
            + H_p * 4 + 2 * D_p * 4      # resident b1 + b2 (f32)
            + 2 * tm * D_p * obytes      # output tile
            + tm * D_p * 4               # f32 accumulator scratch
        )
        # ~15% slack for compiler internals, clamped to ~85% of physical VMEM.
        vmem_limit = int(min(max(int(1.15 * tile_bytes), 4 << 20),
                             int(0.85 * vmem_cap)))

        cost = pl.CostEstimate(
            flops=4 * M_p * D_p * H_p,          # two matmuls, 2*M*D*H each
            transcendentals=0,
            bytes_accessed=int(
                M_p * D_p * cbytes                              # x streamed once
                + row_tiles * 2 * D_p * H_p * cbytes            # W1+W2 re-streamed per row tile
                + (H_p + D_p) * 4                               # biases
                + M_p * D_p * obytes),                          # output writeback
        )

        kernel = functools.partial(ffn_kernel, tn=tn, precision=precision)

        out_p = pl.pallas_call(
            kernel,
            out_shape=jax.ShapeDtypeStruct((M_p, D_p), odt),
            grid_spec=pltpu.PrefetchScalarGridSpec(
                num_scalar_prefetch=0,
                grid=grid,
                in_specs=[
                    pl.BlockSpec((tm, D_p), lambda i, j: (i, 0)),   # x rows
                    pl.BlockSpec((D_p, tn), lambda i, j: (0, j)),   # W1 slab
                    pl.BlockSpec((1, H_p), lambda i, j: (0, 0)),    # b1 resident
                    pl.BlockSpec((tn, D_p), lambda i, j: (j, 0)),   # W2 slab
                    pl.BlockSpec((1, D_p), lambda i, j: (0, 0)),    # b2 resident
                ],
                out_specs=pl.BlockSpec((tm, D_p), lambda i, j: (i, 0)),
                scratch_shapes=[pltpu.VMEM((tm, D_p), jnp.float32)],
            ),
            compiler_params=pltpu.CompilerParams(
                dimension_semantics=("parallel", "arbitrary"),
                vmem_limit_bytes=vmem_limit,
            ),
            cost_estimate=cost,
        )(x_p, w1_p, b1_p, w2_p, b2_p)

        out = out_p[:M, :d_model]
        return out.reshape(*lead_shape, d_model)

    return jax.jit(forward)


if __name__ == "__main__":
    key = jax.random.PRNGKey(0)
    batch, seq, d_model = 2, 16, 128
    hidden = 4 * d_model

    k_x, k_w1, k_b1, k_w2, k_b2 = jax.random.split(key, 5)
    x = jax.random.normal(k_x, (batch, seq, d_model), dtype=jnp.float32)

    # Deterministic "PyTorch-like" init (uniform in +/- 1/sqrt(fan_in)),
    # stored pre-transposed as (in, out).
    lim1 = 1.0 / jnp.sqrt(jnp.float32(d_model))
    lim2 = 1.0 / jnp.sqrt(jnp.float32(hidden))
    w1 = jax.random.uniform(k_w1, (d_model, hidden), jnp.float32, -lim1, lim1)
    b1 = jax.random.uniform(k_b1, (hidden,), jnp.float32, -lim1, lim1)
    w2 = jax.random.uniform(k_w2, (hidden, d_model), jnp.float32, -lim2, lim2)
    b2 = jax.random.uniform(k_b2, (d_model,), jnp.float32, -lim2, lim2)

    # Reference (same math as the PyTorch module in eval mode), f32 throughout.
    x2 = x.reshape(-1, d_model)
    h_ref = jnp.maximum(
        lax.dot(x2, w1, precision=lax.Precision.HIGHEST) + b1, 0.0)
    ref = (lax.dot(h_ref, w2, precision=lax.Precision.HIGHEST)
           + b2).reshape(batch, seq, d_model)

    # 1) Exact-f32 path with small tiles: exercises multi row-tile and multi
    #    hidden-tile accumulation plus the in-kernel b1 slicing (grid=(2, 4)).
    ffn_f32 = make_feed_forward(w1, b1, w2, b2, tile_m=16, tile_n=128,
                                compute_dtype=jnp.float32)
    out_f32 = ffn_f32(x)
    jax.block_until_ready(out_f32)
    assert out_f32.shape == (batch, seq, d_model)
    assert jnp.allclose(out_f32, ref, atol=1e-4, rtol=1e-4)

    # 2) Default bf16 MXU path with generation-specific tiles.
    ffn_bf16 = make_feed_forward(w1, b1, w2, b2)
    out_bf16 = ffn_bf16(x)
    jax.block_until_ready(out_bf16)
    assert out_bf16.shape == (batch, seq, d_model)
    assert jnp.allclose(out_bf16, ref, atol=3e-2, rtol=3e-2)

    # 3) Configurable bf16 output (halves writeback traffic / output buffers).
    ffn_bf16_out = make_feed_forward(w1, b1, w2, b2, out_dtype=jnp.bfloat16)
    out_bo = ffn_bf16_out(x)
    jax.block_until_ready(out_bo)
    assert out_bo.dtype == jnp.bfloat16
    assert jnp.allclose(out_bo.astype(jnp.float32), ref, atol=5e-2, rtol=5e-2)

    print("KERNEL_OK")
</pallas_src>

<mosaic_0001>
module attributes {stable_mosaic.version = 11 : i64} {
  func.func @ffn_kernel(%arg0: i32, %arg1: i32, %arg2: memref<16x128xf32, #tpu.memory_space<vmem>>, %arg3: memref<128x128xf32, #tpu.memory_space<vmem>>, %arg4: memref<1x512xf32, #tpu.memory_space<vmem>>, %arg5: memref<128x128xf32, #tpu.memory_space<vmem>>, %arg6: memref<1x128xf32, #tpu.memory_space<vmem>>, %arg7: memref<16x128xf32, #tpu.memory_space<vmem>>, %arg8: memref<16x128xf32, #tpu.memory_space<vmem>>) attributes {dimension_semantics = [#tpu.dimension_semantics<parallel>, #tpu.dimension_semantics<arbitrary>], iteration_bounds = array<i64: 2, 4>, scalar_prefetch = 0 : i64, scratch_operands = 1 : i64, tpu.core_type = #tpu.core_type<tc>, window_params = [{transform_indices = @transform_0, window_bounds = array<i64: 16, 128>}, {transform_indices = @transform_1, window_bounds = array<i64: 128, 128>}, {pipeline_mode = #tpu.pipeline_mode<synchronous>, transform_indices = @transform_2, window_bounds = array<i64: 1, 512>}, {transform_indices = @transform_3, window_bounds = array<i64: 128, 128>}, {pipeline_mode = #tpu.pipeline_mode<synchronous>, transform_indices = @transform_4, window_bounds = array<i64: 1, 128>}, {transform_indices = @transform_5, window_bounds = array<i64: 16, 128>}]} {
    %c0_i32 = arith.constant 0 : i32
    %0 = arith.cmpi eq, %arg1, %c0_i32 : i32
    %1 = arith.extui %0 : i1 to i32
    %c0_i32_0 = arith.constant 0 : i32
    %2 = arith.cmpi ne, %1, %c0_i32_0 : i32
    scf.if %2 {
      %cst_14 = arith.constant 0.000000e+00 : f32
      %22 = vector.broadcast %cst_14 : f32 to vector<16x128xf32>
      %c0_15 = arith.constant 0 : index
      %c0_16 = arith.constant 0 : index
      %23 = vector.load %arg8[%c0_15, %c0_16] : memref<16x128xf32, #tpu.memory_space<vmem>>, vector<16x128xf32>
      tpu.vector_store %arg8[%c0_15, %c0_16], %22 {strides = array<i32>} : memref<16x128xf32, #tpu.memory_space<vmem>>, vector<16x128xf32>,
    } else {
    }
    %c128_i32 = arith.constant 128 : i32
    %3 = arith.muli %arg1, %c128_i32 : i32
    %4 = tpu.assume_multiple %3, 128 : i32
    %c0 = arith.constant 0 : index
    %5 = arith.index_cast %4 : i32 to index
    %6 = vector.load %arg4[%c0, %5] : memref<1x512xf32, #tpu.memory_space<vmem>>, vector<1x128xf32>
    %c0_1 = arith.constant 0 : index
    %c0_2 = arith.constant 0 : index
    %7 = vector.load %arg2[%c0_1, %c0_2] : memref<16x128xf32, #tpu.memory_space<vmem>>, vector<16x128xf32>
    %c0_3 = arith.constant 0 : index
    %c0_4 = arith.constant 0 : index
    %8 = vector.load %arg3[%c0_3, %c0_4] : memref<128x128xf32, #tpu.memory_space<vmem>>, vector<128x128xf32>
    %cst = arith.constant dense<0.000000e+00> : vector<16x128xf32>
    %9 = tpu.matmul %7, %8, %cst {dimension_numbers = #tpu.dot_dimension_numbers<[1], [0], [0], [1], [0, 0, 1, 1], [], []>, precision = #tpu.contract_precision<fp32>} : vector<16x128xf32>, vector<128x128xf32>, vector<16x128xf32> -> vector<16x128xf32>
    %10 = vector.broadcast %6 : vector<1x128xf32> to vector<16x128xf32>
    %11 = arith.addf %9, %10 : vector<16x128xf32>
    %cst_5 = arith.constant 0.000000e+00 : f32
    %12 = vector.broadcast %cst_5 : f32 to vector<16x128xf32>
    %13 = arith.maximumf %11, %12 : vector<16x128xf32>
    %c0_6 = arith.constant 0 : index
    %c0_7 = arith.constant 0 : index
    %14 = vector.load %arg8[%c0_6, %c0_7] : memref<16x128xf32, #tpu.memory_space<vmem>>, vector<16x128xf32>
    %c0_8 = arith.constant 0 : index
    %c0_9 = arith.constant 0 : index
    %15 = vector.load %arg5[%c0_8, %c0_9] : memref<128x128xf32, #tpu.memory_space<vmem>>, vector<128x128xf32>
    %cst_10 = arith.constant dense<0.000000e+00> : vector<16x128xf32>
    %16 = tpu.matmul %13, %15, %cst_10 {dimension_numbers = #tpu.dot_dimension_numbers<[1], [0], [0], [1], [0, 0, 1, 1], [], []>, precision = #tpu.contract_precision<fp32>} : vector<16x128xf32>, vector<128x128xf32>, vector<16x128xf32> -> vector<16x128xf32>
    %17 = arith.addf %14, %16 : vector<16x128xf32>
    %c0_11 = arith.constant 0 : index
    %c0_12 = arith.constant 0 : index
    %18 = vector.load %arg8[%c0_11, %c0_12] : memref<16x128xf32, #tpu.memory_space<vmem>>, vector<16x128xf32>
    tpu.vector_store %arg8[%c0_11, %c0_12], %17 {strides = array<i32>} : memref<16x128xf32, #tpu.memory_space<vmem>>, vector<16x128xf32>,
    %c3_i32 = arith.constant 3 : i32
    %19 = arith.cmpi eq, %arg1, %c3_i32 : i32
    %20 = arith.extui %19 : i1 to i32
    %c0_i32_13 = arith.constant 0 : i32
    %21 = arith.cmpi ne, %20, %c0_i32_13 : i32
    scf.if %21 {
      %c0_14 = arith.constant 0 : index
      %c0_15 = arith.constant 0 : index
      %22 = vector.load %arg8[%c0_14, %c0_15] : memref<16x128xf32, #tpu.memory_space<vmem>>, vector<16x128xf32>
      %c0_16 = arith.constant 0 : index
      %c0_17 = arith.constant 0 : index
      %23 = vector.load %arg6[%c0_16, %c0_17] : memref<1x128xf32, #tpu.memory_space<vmem>>, vector<1x128xf32>
      %24 = vector.broadcast %23 : vector<1x128xf32> to vector<16x128xf32>
      %25 = arith.addf %22, %24 : vector<16x128xf32>
      %c0_18 = arith.constant 0 : index
      %c0_19 = arith.constant 0 : index
      %26 = vector.load %arg7[%c0_18, %c0_19] : memref<16x128xf32, #tpu.memory_space<vmem>>, vector<16x128xf32>
      tpu.vector_store %arg7[%c0_18, %c0_19], %25 {strides = array<i32>} : memref<16x128xf32, #tpu.memory_space<vmem>>, vector<16x128xf32>,
    } else {
    }
    return
  }
  func.func @transform_0(%arg0: i32, %arg1: i32) -> (i32, i32) {
    %c0_i32 = arith.constant 0 : i32
    %c0_i32_0 = arith.constant 0 : i32
    return %arg0, %c0_i32 : i32, i32
  }
  func.func @transform_1(%arg0: i32, %arg1: i32) -> (i32, i32) {
    %c0_i32 = arith.constant 0 : i32
    %c0_i32_0 = arith.constant 0 : i32
    return %c0_i32, %arg1 : i32, i32
  }
  func.func @transform_2(%arg0: i32, %arg1: i32) -> (i32, i32) {
    %c0_i32 = arith.constant 0 : i32
    %c0_i32_0 = arith.constant 0 : i32
    %c0_i32_1 = arith.constant 0 : i32
    return %c0_i32, %c0_i32_0 : i32, i32
  }
  func.func @transform_3(%arg0: i32, %arg1: i32) -> (i32, i32) {
    %c0_i32 = arith.constant 0 : i32
    %c0_i32_0 = arith.constant 0 : i32
    return %arg1, %c0_i32 : i32, i32
  }
  func.func @transform_4(%arg0: i32, %arg1: i32) -> (i32, i32) {
    %c0_i32 = arith.constant 0 : i32
    %c0_i32_0 = arith.constant 0 : i32
    %c0_i32_1 = arith.constant 0 : i32
    return %c0_i32, %c0_i32_0 : i32, i32
  }
  func.func @transform_5(%arg0: i32, %arg1: i32) -> (i32, i32) {
    %c0_i32 = arith.constant 0 : i32
    %c0_i32_0 = arith.constant 0 : i32
    return %arg0, %c0_i32 : i32, i32
  }
}

</mosaic_0001>

<llo_original>
// kernel: forward.1
$region0: #{forward.1}
  #allocation0 [shape = 'u32[]', space=smem, size = 0x4, offset = 0x4, fixed_abs, tag = 'smem constant byte address 0x4 - core index']
  #allocation1 [shape = 'u32[144,128]{1,0:T(1,128)}', space=vmem, size = 0x12000, scoped, tag = 'internal scratch']
  #allocation2 [shape = 'f32[16,128]{1,0:T(8,128)}', space=vmem, size = 0x2000, scoped, tag = 'scratch operand']
  %s0 = inlined_call_operand.hbm [shape: f32[32,128], index: 0, kind: input, shape index: {}]
  %s1 = inlined_call_operand.hbm [shape: f32[128,512], index: 1, kind: input, shape index: {}]
  %s2 = inlined_call_operand.vmem [shape: f32[1,512], index: 2, kind: input, shape index: {}]
  %s3 = inlined_call_operand.hbm [shape: f32[512,128], index: 3, kind: input, shape index: {}]
  %s4 = inlined_call_operand.vmem [shape: f32[1,128], index: 4, kind: input, shape index: {}]
  %s5 = inlined_call_operand.hbm [shape: f32[32,128], index: 5, kind: output, shape index: {}]
  %s6 = sld [smem:[#allocation0]]
  $region73: #{forward.1} parent=0
    _
  %s8 = ssub.s32 1, %s6
  %s9 = scalar_select 0, %s8, %s6
  $region1: #{forward.1} parent=0
    #allocation3 [shape = 'u8[16384]{0}', space=vmem, size = 0x4000, scoped, tag = 'input window, operand 0']
    #allocation4 [shape = 's32[2]{0}', space=sflag, size = 0x8, scoped, tag = 'scoped memory for forward.1']
    #allocation5 [shape = 's32[2]{0}', space=sflag, size = 0x8, scoped, tag = 'scoped memory for forward.1']
    #allocation6 [shape = 'u8[131072]{0}', space=vmem, size = 0x20000, scoped, tag = 'input window, operand 1']
    #allocation7 [shape = 's32[2]{0}', space=sflag, size = 0x8, scoped, tag = 'scoped memory for forward.1']
    #allocation8 [shape = 'u8[131072]{0}', space=vmem, size = 0x20000, scoped, tag = 'input window, operand 3']
    #allocation9 [shape = 'u8[16384]{0}', space=vmem, size = 0x4000, scoped, tag = 'output window, operand 0']
    %10 = vsyncpa [#allocation4], 0
    %s11 = scalar_lea.sflag [#allocation4], 1
    %12 = vsyncpa %s11, 0
    %13 = vsyncpa [#allocation7], 0
    %s14 = scalar_lea.sflag [#allocation7], 1
    %15 = vsyncpa %s14, 0
    %16 = vsyncpa [#allocation5], 0
    %s17 = scalar_lea.sflag [#allocation5], 1
    %18 = vsyncpa %s17, 0
    loop: start=0, step=1, limit=10
    $region2: #{forward.1} parent=1 // loop_pre_header
      _
    $region3: #{forward.1} parent=1 // loop_header
      %s20 = sphi 0, %s24
      %p21 = scmp.ge.s32.totalorder %s20, 10
      %s27 = sphi 0, %s39
      %s28 = sphi 0, %s35
      %s29 = sphi 0, %s27
      %s30 = sphi 0, %s28
      %s31 = sphi 0, %s29
      %s32 = sphi 0, %s30
      %s42 = sphi 0, %s44
      %s45 = sphi 0, %s42
      %s46 = sphi 0, %s45
      %s62 = sphi 0, %s46
      %s68 = sphi 0, %s70
      %s71 = sphi 0, %s68
      %s72 = sphi 0, %s71
      %s88 = sphi 0, %s72
      %s92 = sphi 0, %s92
      %s94 = sphi 0, %s92
      %s95 = sphi 0, %s94
      %s109 = sphi 0, %s95
      %s115 = sphi 0, %s117
      %s118 = sphi 0, %s115
      %s119 = sphi 0, %s118
      %s135 = sphi 0, %s119
      %s139 = sphi 0, %s139
      %s141 = sphi 0, %s139
      %s142 = sphi 0, %s141
      %s156 = sphi 0, %s142
      %s162 = sphi 0, %s164
      %s165 = sphi 0, %s162
      %s166 = sphi 0, %s165
      %s182 = sphi 0, %s166
    $region4: #{forward.1} parent=1 // loop_header_branch
      %23 = sbr.rel (%p21) target = $region8
    $region5: #{forward.1} parent=1 // loop_body
      %s25 = ssub.s32 %s20, 1
      %s26 = ssub.s32 %s20, 2
      %s33 = sadd.s32 1, %s28
      %p34 = scmp.ge.s32.totalorder %s33, 4
      %s35 = scalar_select %p34, 0, %s33
      %s36 = sadd.s32 1, %s27
      %s37 = scalar_select %p34, %s36, %s27
      %p38 = scmp.ge.s32.totalorder %s37, 2
      %s39 = scalar_select %p38, 0, %s37
      %s40 = ssub.s32 %s27, %s39
      %p41 = scmp.eq.s32.totalorder %s40, 0
      %s43 = sadd.s32 %s42, 1
      %s44 = scalar_select %p41, %s42, %s43
      %p47 = pneg %p41
      %p48 = scmp.eq.s32.totalorder %s20, 7
      %p49 = por %p47, %p48
      %p50 = scmp.ne.s32.totalorder %s42, %s45
      %p51 = scmp.eq.s32.totalorder %s20, 0
      %p52 = por %p50, %p51
      %p53 = scmp.ne.s32.totalorder %s42, %s45
      %p54 = scmp.eq.s32.totalorder %s25, 7
      %p55 = por %p53, %p54
      %p56 = scmp.ne.s32.totalorder %s45, %s46
      %p57 = scmp.eq.s32.totalorder %s25, 0
      %p58 = por %p56, %p57
      %p59 = scmp.ne.s32.totalorder %s45, %s46
      %p60 = scmp.eq.s32.totalorder %s26, 7
      %p61 = por %p59, %p60
      %p63 = scmp.ne.s32.totalorder %s46, %s62
      %p64 = scmp.eq.s32.totalorder %s26, 0
      %p65 = por %p63, %p64
      %s66 = ssub.s32 %s28, %s35
      %p67 = scmp.eq.s32.totalorder %s66, 0
      %s69 = sadd.s32 %s68, 1
      %s70 = scalar_select %p67, %s68, %s69
      %p73 = pneg %p67
      %p74 = scmp.eq.s32.totalorder %s20, 7
      %p75 = por %p73, %p74
      %p76 = scmp.ne.s32.totalorder %s68, %s71
      %p77 = scmp.eq.s32.totalorder %s20, 0
      %p78 = por %p76, %p77
      %p79 = scmp.ne.s32.totalorder %s68, %s71
      %p80 = scmp.eq.s32.totalorder %s25, 7
      %p81 = por %p79, %p80
      %p82 = scmp.ne.s32.totalorder %s71, %s72
      %p83 = scmp.eq.s32.totalorder %s25, 0
      %p84 = por %p82, %p83
      %p85 = scmp.ne.s32.totalorder %s71, %s72
      %p86 = scmp.eq.s32.totalorder %s26, 7
      %p87 = por %p85, %p86
      %p89 = scmp.ne.s32.totalorder %s72, %s88
      %p90 = scmp.eq.s32.totalorder %s26, 0
      %p91 = por %p89, %p90
      %s93 = sadd.s32 %s92, 1
      %p96 = scmp.eq.s32.totalorder %s20, 7
      %p97 = scmp.ne.s32.totalorder %s92, %s94
      %p98 = scmp.eq.s32.totalorder %s20, 0
      %p99 = por %p97, %p98
      %p100 = scmp.ne.s32.totalorder %s92, %s94
      %p101 = scmp.eq.s32.totalorder %s25, 7
      %p102 = por %p100, %p101
      %p103 = scmp.ne.s32.totalorder %s94, %s95
      %p104 = scmp.eq.s32.totalorder %s25, 0
      %p105 = por %p103, %p104
      %p106 = scmp.ne.s32.totalorder %s94, %s95
      %p107 = scmp.eq.s32.totalorder %s26, 7
      %p108 = por %p106, %p107
      %p110 = scmp.ne.s32.totalorder %s95, %s109
      %p111 = scmp.eq.s32.totalorder %s26, 0
      %p112 = por %p110, %p111
      %s113 = ssub.s32 %s28, %s35
      %p114 = scmp.eq.s32.totalorder %s113, 0
      %s116 = sadd.s32 %s115, 1
      %s117 = scalar_select %p114, %s115, %s116
      %p120 = pneg %p114
      %p121 = scmp.eq.s32.totalorder %s20, 7
      %p122 = por %p120, %p121
      %p123 = scmp.ne.s32.totalorder %s115, %s118
      %p124 = scmp.eq.s32.totalorder %s20, 0
      %p125 = por %p123, %p124
      %p126 = scmp.ne.s32.totalorder %s115, %s118
      %p127 = scmp.eq.s32.totalorder %s25, 7
      %p128 = por %p126, %p127
      %p129 = scmp.ne.s32.totalorder %s118, %s119
      %p130 = scmp.eq.s32.totalorder %s25, 0
      %p131 = por %p129, %p130
      %p132 = scmp.ne.s32.totalorder %s118, %s119
      %p133 = scmp.eq.s32.totalorder %s26, 7
      %p134 = por %p132, %p133
      %p136 = scmp.ne.s32.totalorder %s119, %s135
      %p137 = scmp.eq.s32.totalorder %s26, 0
      %p138 = por %p136, %p137
      %s140 = sadd.s32 %s139, 1
      %p143 = scmp.eq.s32.totalorder %s20, 7
      %p144 = scmp.ne.s32.totalorder %s139, %s141
      %p145 = scmp.eq.s32.totalorder %s20, 0
      %p146 = por %p144, %p145
      %p147 = scmp.ne.s32.totalorder %s139, %s141
      %p148 = scmp.eq.s32.totalorder %s25, 7
      %p149 = por %p147, %p148
      %p150 = scmp.ne.s32.totalorder %s141, %s142
      %p151 = scmp.eq.s32.totalorder %s25, 0
      %p152 = por %p150, %p151
      %p153 = scmp.ne.s32.totalorder %s141, %s142
      %p154 = scmp.eq.s32.totalorder %s26, 7
      %p155 = por %p153, %p154
      %p157 = scmp.ne.s32.totalorder %s142, %s156
      %p158 = scmp.eq.s32.totalorder %s26, 0
      %p159 = por %p157, %p158
      %s160 = ssub.s32 %s27, %s39
      %p161 = scmp.eq.s32.totalorder %s160, 0
      %s163 = sadd.s32 %s162, 1
      %s164 = scalar_select %p161, %s162, %s163
      %p167 = pneg %p161
      %p168 = scmp.eq.s32.totalorder %s20, 7
      %p169 = por %p167, %p168
      %p170 = scmp.ne.s32.totalorder %s162, %s165
      %p171 = scmp.eq.s32.totalorder %s20, 0
      %p172 = por %p170, %p171
      %p173 = scmp.ne.s32.totalorder %s162, %s165
      %p174 = scmp.eq.s32.totalorder %s25, 7
      %p175 = por %p173, %p174
      %p176 = scmp.ne.s32.totalorder %s165, %s166
      %p177 = scmp.eq.s32.totalorder %s25, 0
      %p178 = por %p176, %p177
      %p179 = scmp.ne.s32.totalorder %s165, %s166
      %p180 = scmp.eq.s32.totalorder %s26, 7
      %p181 = por %p179, %p180
      %p183 = scmp.ne.s32.totalorder %s166, %s182
      %p184 = scmp.eq.s32.totalorder %s26, 0
      %p185 = por %p183, %p184
      %p186 = scmp.le.s32.totalorder 1, %s20
      %p187 = scmp.lt.s32.totalorder %s20, 9
      %p188 = pnand %p186, %p187
      %p189 = pneg %p188
      // Predicated region
      $region9: #{forward.1} parent=5 // pred_check
        _
      $region10: #{forward.1} parent=5 // pred_check_branch
        %191 = sbr.rel (%p188) target = $region12
      $region11: #{forward.1} parent=5 // pred_region
        %s192 = ssub.s32 %s20, 1
        // Predicated region
        $region13: #{forward.1} parent=11 // pred_check
          %p193 = pneg %p105
        $region14: #{forward.1} parent=11 // pred_check_branch
          %195 = sbr.rel (%p193) target = $region16
        $region15: #{forward.1} parent=11 // pred_region
          _
        $region16: #{forward.1} parent=11 // pred_fallthru
          _
        // Predicated region
        $region17: #{forward.1} parent=11 // pred_check
          %p196 = pneg %p152
        $region18: #{forward.1} parent=11 // pred_check_branch
          %198 = sbr.rel (%p196) target = $region20
        $region19: #{forward.1} parent=11 // pred_region
          _
        $region20: #{forward.1} parent=11 // pred_fallthru
          _
      $region12: #{forward.1} parent=5 // pred_fallthru
        _
      %p199 = scmp.lt.s32.totalorder %s20, 8
      // Predicated region
      $region21: #{forward.1} parent=5 // pred_check
        %p200 = pneg %p199
      $region22: #{forward.1} parent=5 // pred_check_branch
        %202 = sbr.rel (%p200) target = $region24
      $region23: #{forward.1} parent=5 // pred_region
        // Predicated region
        $region25: #{forward.1} parent=23 // pred_check
          %p203 = pneg %p52
        $region26: #{forward.1} parent=23 // pred_check_branch
          %205 = sbr.rel (%p203) target = $region28
        $region27: #{forward.1} parent=23 // pred_region
          %s206 = sand.u32 %s42, 1
          %s207 = scalar_lea.sflag [#allocation4], %s206
          %s208 = sand.u32 %s42, 1
          %s209 = smul.addr %s208, 16
          %s210 = scalar_lea.vmem [#allocation3], %s209
          %s211 = smul.u32 2, %s27
          %s213 = ssub.s32 256, 256
          %214 = vsyncadd %s207, %s213
          %s215 = smul.addr %s211, 128
          %s216 = scalar_lea.hbm %s0, %s215
          %s217 = sshll.u32 %s210, 4
          %s218 = int_to_ptr.vmem [resolvable:$true] %s217
          %223 = dma.hbm_to_vmem [thread:$0]  %s216, 256, %s218, %s207, 128, 128, 8
        $region28: #{forward.1} parent=23 // pred_fallthru
          _
        // Predicated region
        $region29: #{forward.1} parent=23 // pred_check
          %p224 = pneg %p78
        $region30: #{forward.1} parent=23 // pred_check_branch
          %226 = sbr.rel (%p224) target = $region32
        $region31: #{forward.1} parent=23 // pred_region
          %s227 = sand.u32 %s20, 1
          %s228 = scalar_lea.sflag [#allocation7], %s227
          %s229 = sand.u32 %s68, 1
          %s230 = smul.addr %s229, 128
          %s231 = scalar_lea.vmem [#allocation6], %s230
          %s233 = ssub.s32 2048, 2048
          %234 = vsyncadd %s228, %s233
          %s235 = smul.addr %s28, 128
          %s236 = scalar_lea.hbm %s1, %s235
          %s237 = sshll.u32 %s231, 4
          %s238 = int_to_ptr.vmem [resolvable:$true] %s237
          %243 = dma.hbm_to_vmem [thread:$0]  %s236, 2048, %s238, %s228, 512, 128, 8
        $region32: #{forward.1} parent=23 // pred_fallthru
          _
        // Predicated region
        $region33: #{forward.1} parent=23 // pred_check
          %p244 = pneg %p125
        $region34: #{forward.1} parent=23 // pred_check_branch
          %246 = sbr.rel (%p244) target = $region36
        $region35: #{forward.1} parent=23 // pred_region
          %s247 = sand.u32 %s20, 1
          %s248 = scalar_lea.sflag [#allocation7], %s247
          %s249 = sand.u32 %s115, 1
          %s250 = smul.addr %s249, 128
          %s251 = scalar_lea.vmem [#allocation8], %s250
          %s252 = smul.u32 16, %s28
          %s254 = ssub.s32 2048, 2048
          %255 = vsyncadd %s248, %s254
          %s256 = smul.addr %s252, 128
          %s257 = scalar_lea.hbm %s3, %s256
          %s258 = sshll.u32 %s251, 4
          %s259 = int_to_ptr.vmem [resolvable:$true] %s258
          %264 = dma.hbm_to_vmem [thread:$0]  %s257, 2048, %s259, %s248, 128, 128, 8
        $region36: #{forward.1} parent=23 // pred_fallthru
          _
      $region24: #{forward.1} parent=5 // pred_fallthru
        _
      %p265 = scmp.le.s32.totalorder 1, %s20
      %p266 = scmp.lt.s32.totalorder %s20, 9
      %p267 = pnand %p265, %p266
      %p268 = pneg %p267
      // Predicated region
      $region37: #{forward.1} parent=5 // pred_check
        _
      $region38: #{forward.1} parent=5 // pred_check_branch
        %270 = sbr.rel (%p267) target = $region40
      $region39: #{forward.1} parent=5 // pred_region
        %s271 = ssub.s32 %s20, 1
        %s272 = sand.u32 %s45, 1
        %s273 = scalar_lea.sflag [#allocation4], %s272
        %s274 = sand.u32 %s45, 1
        %s275 = smul.addr %s274, 16
        %s276 = scalar_lea.vmem [#allocation3], %s275
        // Predicated region
        $region41: #{forward.1} parent=39 // pred_check
          %p277 = pneg %p58
        $region42: #{forward.1} parent=39 // pred_check_branch
          %279 = sbr.rel (%p277) target = $region44
        $region43: #{forward.1} parent=39 // pred_region
          %280 = dma.done %s273, 256
        $region44: #{forward.1} parent=39 // pred_fallthru
          _
        %s281 = sand.u32 %s25, 1
        %s282 = scalar_lea.sflag [#allocation7], %s281
        %s283 = sand.u32 %s71, 1
        %s284 = smul.addr %s283, 128
        %s285 = scalar_lea.vmem [#allocation6], %s284
        // Predicated region
        $region45: #{forward.1} parent=39 // pred_check
          %p286 = pneg %p84
        $region46: #{forward.1} parent=39 // pred_check_branch
          %288 = sbr.rel (%p286) target = $region48
        $region47: #{forward.1} parent=39 // pred_region
          %289 = dma.done %s282, 2048
        $region48: #{forward.1} parent=39 // pred_fallthru
          _
        %s290 = sand.u32 %s25, 1
        %s291 = scalar_lea.sflag [#allocation7], %s290
        %s292 = sand.u32 %s118, 1
        %s293 = smul.addr %s292, 128
        %s294 = scalar_lea.vmem [#allocation8], %s293
        // Predicated region
        $region49: #{forward.1} parent=39 // pred_check
          %p295 = pneg %p131
        $region50: #{forward.1} parent=39 // pred_check_branch
          %297 = sbr.rel (%p295) target = $region52
        $region51: #{forward.1} parent=39 // pred_region
          %298 = dma.done %s291, 2048
        $region52: #{forward.1} parent=39 // pred_fallthru
          _
        %s299 = sand.u32 %s45, 1
        %s300 = scalar_lea.sflag [#allocation4], %s299
        %s301 = sand.u32 %s45, 1
        %s302 = smul.addr %s301, 16
        %s303 = scalar_lea.vmem [#allocation3], %s302
        %p304 = pneg %p58
        %p305 = pneg %p55
        %s306 = sand.u32 %s25, 1
        %s307 = scalar_lea.sflag [#allocation7], %s306
        %s308 = sand.u32 %s71, 1
        %s309 = smul.addr %s308, 128
        %s310 = scalar_lea.vmem [#allocation6], %s309
        %p311 = pneg %p84
        %p312 = pneg %p81
        %p313 = pneg %p105
        %p314 = pneg %p102
        %s315 = sand.u32 %s25, 1
        %s316 = scalar_lea.sflag [#allocation7], %s315
        %s317 = sand.u32 %s118, 1
        %s318 = smul.addr %s317, 128
        %s319 = scalar_lea.vmem [#allocation8], %s318
        %p320 = pneg %p131
        %p321 = pneg %p128
        %p322 = pneg %p152
        %p323 = pneg %p149
        %p324 = pneg %p178
        %p325 = pneg %p175
        %s326 = sand.u32 %s165, 1
        %s327 = scalar_lea.sflag [#allocation5], %s326
        %s328 = sand.u32 %s165, 1
        %s329 = smul.addr %s328, 16
        %s330 = scalar_lea.vmem [#allocation9], %s329
        %s331 = smul.u32 2, %s29
        %s332 = smul.u32 16, %s30
        %s333 = smul.u32 2, %s29
        %p334 = scmp.eq.s32.totalorder %s30, 0
        // Predicated region
        $region53: #{forward.1} parent=39 // pred_check
          %p335 = pneg %p334
        $region54: #{forward.1} parent=39 // pred_check_branch
          %337 = sbr.rel (%p335) target = $region56
        $region55: #{forward.1} parent=39 // pred_region
          %338 = vst [vmem:[#allocation2] sm:$0xff] 0.0
          %339 = vst [vmem:[#allocation2 + $0x8] sm:$0xff] 0.0
        $region56: #{forward.1} parent=39 // pred_fallthru
          _
        %s340 = smul.u32 %s30, 128
        %s341 = sshra.s32 %s340, 7
        %s342 = sand.u32 %s340, 127
        %s343 = scalar_lea.vmem %s2, %s341
        %v344 = vld [vmem:[%s343] sm:$0x1]
        %v345 = vld [vmem:[%s276] sm:$0xff]
        %v346 = vld [vmem:[%s276 + $0x8] sm:$0xff]
        %v347 = vld [vmem:[%s285] sm:$0xff]
        %v348 = vld [vmem:[%s285 + $0x8] sm:$0xff]
        %v349 = vld [vmem:[%s285 + $0x10] sm:$0xff]
        %v350 = vld [vmem:[%s285 + $0x18] sm:$0xff]
        %v351 = vld [vmem:[%s285 + $0x20] sm:$0xff]
        %v352 = vld [vmem:[%s285 + $0x28] sm:$0xff]
        %v353 = vld [vmem:[%s285 + $0x30] sm:$0xff]
        %v354 = vld [vmem:[%s285 + $0x38] sm:$0xff]
        %v355 = vld [vmem:[%s285 + $0x40] sm:$0xff]
        %v356 = vld [vmem:[%s285 + $0x48] sm:$0xff]
        %v357 = vld [vmem:[%s285 + $0x50] sm:$0xff]
        %v358 = vld [vmem:[%s285 + $0x58] sm:$0xff]
        %v359 = vld [vmem:[%s285 + $0x60] sm:$0xff]
        %v360 = vld [vmem:[%s285 + $0x68] sm:$0xff]
        %v361 = vld [vmem:[%s285 + $0x70] sm:$0xff]
        %v362 = vld [vmem:[%s285 + $0x78] sm:$0xff]
        %v364 = vlaneseq
        %v365 = vshrl.u32 %v364, 7
        %v366 = vsub.s32 0, %v365
        %v367 = vrot.slane %v344, %v366
        %369 = vmatprep.subr.mxu0 0.0
        %v370 = vand.u32 %v362, 4294901760
        %371 = vmatpush1.msra.mxu0 %v370
        %372 = vmatprep.subr.mxu0 0.0
        %v373 = vand.u32 %v361, 4294901760
        %374 = vmatpush1.msra.mxu0 %v373
        %375 = vmatprep.subr.mxu0 0.0
        %v376 = vand.u32 %v360, 4294901760
        %377 = vmatpush1.msra.mxu0 %v376
        %378 = vmatprep.subr.mxu0 0.0
        %v379 = vand.u32 %v359, 4294901760
        %380 = vmatpush1.msra.mxu0 %v379
        %381 = vmatprep.subr.mxu0 0.0
        %v382 = vand.u32 %v358, 4294901760
        %383 = vmatpush1.msra.mxu0 %v382
        %384 = vmatprep.subr.mxu0 0.0
        %v385 = vand.u32 %v357, 4294901760
        %386 = vmatpush1.msra.mxu0 %v385
        %387 = vmatprep.subr.mxu0 0.0
        %v388 = vand.u32 %v356, 4294901760
        %389 = vmatpush1.msra.mxu0 %v388
        %390 = vmatprep.subr.mxu0 0.0
        %v391 = vand.u32 %v355, 4294901760
        %392 = vmatpush1.msra.mxu0 %v391
        %393 = vmatprep.subr.mxu0 0.0
        %v394 = vand.u32 %v354, 4294901760
        %395 = vmatpush1.msra.mxu0 %v394
        %396 = vmatprep.subr.mxu0 0.0
        %v397 = vand.u32 %v353, 4294901760
        %398 = vmatpush1.msra.mxu0 %v397
        %399 = vmatprep.subr.mxu0 0.0
        %v400 = vand.u32 %v352, 4294901760
        %401 = vmatpush1.msra.mxu0 %v400
        %402 = vmatprep.subr.mxu0 0.0
        %v403 = vand.u32 %v351, 4294901760
        %404 = vmatpush1.msra.mxu0 %v403
        %405 = vmatprep.subr.mxu0 0.0
        %v406 = vand.u32 %v350, 4294901760
        %407 = vmatpush1.msra.mxu0 %v406
        %408 = vmatprep.subr.mxu0 0.0
        %v409 = vand.u32 %v349, 4294901760
        %410 = vmatpush1.msra.mxu0 %v409
        %411 = vmatprep.subr.mxu0 0.0
        %v412 = vand.u32 %v348, 4294901760
        %413 = vmatpush1.msra.mxu0 %v412
        %414 = vmatprep.subr.mxu0 0.0
        %v415 = vand.u32 %v347, 4294901760
        %416 = vmatpush1.msra.mxu0 %v415
        %417 = vmatprep.subr.mxu0 0.0
        %418 = vmatpush2.msra.mxu0 0.0
        %419 = vmatprep.subr.mxu0 0.0
        %420 = vmatpush2.msra.mxu0 0.0
        %421 = vmatprep.subr.mxu0 0.0
        %422 = vmatpush2.msra.mxu0 0.0
        %423 = vmatprep.subr.mxu0 0.0
        %424 = vmatpush2.msra.mxu0 0.0
        %425 = vmatprep.subr.mxu0 0.0
        %426 = vmatpush2.msra.mxu0 0.0
        %427 = vmatprep.subr.mxu0 0.0
        %428 = vmatpush2.msra.mxu0 0.0
        %429 = vmatprep.subr.mxu0 0.0
        %430 = vmatpush2.msra.mxu0 0.0
        %431 = vmatprep.subr.mxu0 0.0
        %432 = vmatpush2.msra.mxu0 0.0
        %433 = vmatprep.subr.mxu0 0.0
        %434 = vmatpush2.msra.mxu0 0.0
        %435 = vmatprep.subr.mxu0 0.0
        %436 = vmatpush2.msra.mxu0 0.0
        %437 = vmatprep.subr.mxu0 0.0
        %438 = vmatpush2.msra.mxu0 0.0
        %439 = vmatprep.subr.mxu0 0.0
        %440 = vmatpush2.msra.mxu0 0.0
        %441 = vmatprep.subr.mxu0 0.0
        %442 = vmatpush2.msra.mxu0 0.0
        %443 = vmatprep.subr.mxu0 0.0
        %444 = vmatpush2.msra.mxu0 0.0
        %445 = vmatprep.subr.mxu0 0.0
        %446 = vmatpush2.msra.mxu0 0.0
        %447 = vmatprep.subr.mxu0 0.0
        %448 = vmatpush2.msra.mxu0 0.0
        %449 = vmatprep.mubr.f32.mxu0 0.0
        %v450 = vand.u32 %v345, 4294901760
        %v451 = vsub.f32 %v345, %v450
        %v452 = vand.u32 %v451, 4294901760
        %v453 = vsub.f32 %v451, %v452
        %v454 = vand.u32 %v453, 4294901760
        %455 = vmatmul.mubr.f32.gmra.mxu0 %v454
        %v456 = vpop.f32.mrf.mxu0
        %v457 = vadd.f32 %v367, %v456
        %v458 = vpop.f32.mrf.mxu0
        %459 = vmatprep.mubr.f32.mxu0 0.0
        %v460 = vand.u32 %v346, 4294901760
        %v461 = vsub.f32 %v346, %v460
        %v462 = vand.u32 %v461, 4294901760
        %v463 = vsub.f32 %v461, %v462
        %v464 = vand.u32 %v463, 4294901760
        %465 = vmatmul.mubr.f32.gmra.mxu0 %v464
        %v466 = vpop.f32.mrf.mxu0
        %v467 = vadd.f32 %v367, %v466
        %v468 = vpop.f32.mrf.mxu0
        %469 = vdwg.mxu0
        %470 = vmatprep.subr.mxu0 0.0
        %v471 = vand.u32 %v362, 4294901760
        %v472 = vsub.f32 %v362, %v471
        %v473 = vand.u32 %v472, 4294901760
        %v474 = vsub.f32 %v472, %v473
        %v475 = vand.u32 %v474, 4294901760
        %476 = vmatpush1.msra.mxu0 %v475
        %477 = vmatprep.subr.mxu0 0.0
        %v478 = vand.u32 %v361, 4294901760
        %v479 = vsub.f32 %v361, %v478
        %v480 = vand.u32 %v479, 4294901760
        %v481 = vsub.f32 %v479, %v480
        %v482 = vand.u32 %v481, 4294901760
        %483 = vmatpush1.msra.mxu0 %v482
        %484 = vmatprep.subr.mxu0 0.0
        %v485 = vand.u32 %v360, 4294901760
        %v486 = vsub.f32 %v360, %v485
        %v487 = vand.u32 %v486, 4294901760
        %v488 = vsub.f32 %v486, %v487
        %v489 = vand.u32 %v488, 4294901760
        %490 = vmatpush1.msra.mxu0 %v489
        %491 = vmatprep.subr.mxu0 0.0
        %v492 = vand.u32 %v359, 4294901760
        %v493 = vsub.f32 %v359, %v492
        %v494 = vand.u32 %v493, 4294901760
        %v495 = vsub.f32 %v493, %v494
        %v496 = vand.u32 %v495, 4294901760
        %497 = vmatpush1.msra.mxu0 %v496
        %498 = vmatprep.subr.mxu0 0.0
        %v499 = vand.u32 %v358, 4294901760
        %v500 = vsub.f32 %v358, %v499
        %v501 = vand.u32 %v500, 4294901760
        %v502 = vsub.f32 %v500, %v501
        %v503 = vand.u32 %v502, 4294901760
        %504 = vmatpush1.msra.mxu0 %v503
        %505 = vmatprep.subr.mxu0 0.0
        %v506 = vand.u32 %v357, 4294901760
        %v507 = vsub.f32 %v357, %v506
        %v508 = vand.u32 %v507, 4294901760
        %v509 = vsub.f32 %v507, %v508
        %v510 = vand.u32 %v509, 4294901760
        %511 = vmatpush1.msra.mxu0 %v510
        %512 = vmatprep.subr.mxu0 0.0
        %v513 = vand.u32 %v356, 4294901760
        %v514 = vsub.f32 %v356, %v513
        %v515 = vand.u32 %v514, 4294901760
        %v516 = vsub.f32 %v514, %v515
        %v517 = vand.u32 %v516, 4294901760
        %518 = vmatpush1.msra.mxu0 %v517
        %519 = vmatprep.subr.mxu0 0.0
        %v520 = vand.u32 %v355, 4294901760
        %v521 = vsub.f32 %v355, %v520
        %v522 = vand.u32 %v521, 4294901760
        %v523 = vsub.f32 %v521, %v522
        %v524 = vand.u32 %v523, 4294901760
        %525 = vmatpush1.msra.mxu0 %v524
        %526 = vmatprep.subr.mxu0 0.0
        %v527 = vand.u32 %v354, 4294901760
        %v528 = vsub.f32 %v354, %v527
        %v529 = vand.u32 %v528, 4294901760
        %v530 = vsub.f32 %v528, %v529
        %v531 = vand.u32 %v530, 4294901760
        %532 = vmatpush1.msra.mxu0 %v531
        %533 = vmatprep.subr.mxu0 0.0
        %v534 = vand.u32 %v353, 4294901760
        %v535 = vsub.f32 %v353, %v534
        %v536 = vand.u32 %v535, 4294901760
        %v537 = vsub.f32 %v535, %v536
        %v538 = vand.u32 %v537, 4294901760
        %539 = vmatpush1.msra.mxu0 %v538
        %540 = vmatprep.subr.mxu0 0.0
        %v541 = vand.u32 %v352, 4294901760
        %v542 = vsub.f32 %v352, %v541
        %v543 = vand.u32 %v542, 4294901760
        %v544 = vsub.f32 %v542, %v543
        %v545 = vand.u32 %v544, 4294901760
        %546 = vmatpush1.msra.mxu0 %v545
        %547 = vmatprep.subr.mxu0 0.0
        %v548 = vand.u32 %v351, 4294901760
        %v549 = vsub.f32 %v351, %v548
        %v550 = vand.u32 %v549, 4294901760
        %v551 = vsub.f32 %v549, %v550
        %v552 = vand.u32 %v551, 4294901760
        %553 = vmatpush1.msra.mxu0 %v552
        %554 = vmatprep.subr.mxu0 0.0
        %v555 = vand.u32 %v350, 4294901760
        %v556 = vsub.f32 %v350, %v555
        %v557 = vand.u32 %v556, 4294901760
        %v558 = vsub.f32 %v556, %v557
        %v559 = vand.u32 %v558, 4294901760
        %560 = vmatpush1.msra.mxu0 %v559
        %561 = vmatprep.subr.mxu0 0.0
        %v562 = vand.u32 %v349, 4294901760
        %v563 = vsub.f32 %v349, %v562
        %v564 = vand.u32 %v563, 4294901760
        %v565 = vsub.f32 %v563, %v564
        %v566 = vand.u32 %v565, 4294901760
        %567 = vmatpush1.msra.mxu0 %v566
        %568 = vmatprep.subr.mxu0 0.0
        %v569 = vand.u32 %v348, 4294901760
        %v570 = vsub.f32 %v348, %v569
        %v571 = vand.u32 %v570, 4294901760
        %v572 = vsub.f32 %v570, %v571
        %v573 = vand.u32 %v572, 4294901760
        %574 = vmatpush1.msra.mxu0 %v573
        %575 = vmatprep.subr.mxu0 0.0
        %v576 = vand.u32 %v347, 4294901760
        %v577 = vsub.f32 %v347, %v576
        %v578 = vand.u32 %v577, 4294901760
        %v579 = vsub.f32 %v577, %v578
        %v580 = vand.u32 %v579, 4294901760
        %581 = vmatpush1.msra.mxu0 %v580
        %582 = vmatprep.subr.mxu0 0.0
        %583 = vmatpush2.msra.mxu0 0.0
        %584 = vmatprep.subr.mxu0 0.0
        %585 = vmatpush2.msra.mxu0 0.0
        %586 = vmatprep.subr.mxu0 0.0
        %587 = vmatpush2.msra.mxu0 0.0
        %588 = vmatprep.subr.mxu0 0.0
        %589 = vmatpush2.msra.mxu0 0.0
        %590 = vmatprep.subr.mxu0 0.0
        %591 = vmatpush2.msra.mxu0 0.0
        %592 = vmatprep.subr.mxu0 0.0
        %593 = vmatpush2.msra.mxu0 0.0
        %594 = vmatprep.subr.mxu0 0.0
        %595 = vmatpush2.msra.mxu0 0.0
        %596 = vmatprep.subr.mxu0 0.0
        %597 = vmatpush2.msra.mxu0 0.0
        %598 = vmatprep.subr.mxu0 0.0
        %599 = vmatpush2.msra.mxu0 0.0
        %600 = vmatprep.subr.mxu0 0.0
        %601 = vmatpush2.msra.mxu0 0.0
        %602 = vmatprep.subr.mxu0 0.0
        %603 = vmatpush2.msra.mxu0 0.0
        %604 = vmatprep.subr.mxu0 0.0
        %605 = vmatpush2.msra.mxu0 0.0
        %606 = vmatprep.subr.mxu0 0.0
        %607 = vmatpush2.msra.mxu0 0.0
        %608 = vmatprep.subr.mxu0 0.0
        %609 = vmatpush2.msra.mxu0 0.0
        %610 = vmatprep.subr.mxu0 0.0
        %611 = vmatpush2.msra.mxu0 0.0
        %612 = vmatprep.subr.mxu0 0.0
        %613 = vmatpush2.msra.mxu0 0.0
        %614 = vmatprep.mubr.f32.mxu0 0.0
        %v615 = vand.u32 %v345, 4294901760
        %616 = vmatmul.mubr.f32.gmra.mxu0 %v615
        %v617 = vpop.f32.mrf.mxu0
        %v618 = vadd.f32 %v457, %v617
        %v619 = vpop.f32.mrf.mxu0
        %620 = vmatprep.mubr.f32.mxu0 0.0
        %v621 = vand.u32 %v346, 4294901760
        %622 = vmatmul.mubr.f32.gmra.mxu0 %v621
        %v623 = vpop.f32.mrf.mxu0
        %v624 = vadd.f32 %v467, %v623
        %v625 = vpop.f32.mrf.mxu0
        %626 = vdwg.mxu0
        %627 = vmatprep.subr.mxu0 0.0
        %v628 = vand.u32 %v362, 4294901760
        %v629 = vsub.f32 %v362, %v628
        %630 = vmatpush1.msra.mxu0 %v629
        %631 = vmatprep.subr.mxu0 0.0
        %v632 = vand.u32 %v361, 4294901760
        %v633 = vsub.f32 %v361, %v632
        %634 = vmatpush1.msra.mxu0 %v633
        %635 = vmatprep.subr.mxu0 0.0
        %v636 = vand.u32 %v360, 4294901760
        %v637 = vsub.f32 %v360, %v636
        %638 = vmatpush1.msra.mxu0 %v637
        %639 = vmatprep.subr.mxu0 0.0
        %v640 = vand.u32 %v359, 4294901760
        %v641 = vsub.f32 %v359, %v640
        %642 = vmatpush1.msra.mxu0 %v641
        %643 = vmatprep.subr.mxu0 0.0
        %v644 = vand.u32 %v358, 4294901760
        %v645 = vsub.f32 %v358, %v644
        %646 = vmatpush1.msra.mxu0 %v645
        %647 = vmatprep.subr.mxu0 0.0
        %v648 = vand.u32 %v357, 4294901760
        %v649 = vsub.f32 %v357, %v648
        %650 = vmatpush1.msra.mxu0 %v649
        %651 = vmatprep.subr.mxu0 0.0
        %v652 = vand.u32 %v356, 4294901760
        %v653 = vsub.f32 %v356, %v652
        %654 = vmatpush1.msra.mxu0 %v653
        %655 = vmatprep.subr.mxu0 0.0
        %v656 = vand.u32 %v355, 4294901760
        %v657 = vsub.f32 %v355, %v656
        %658 = vmatpush1.msra.mxu0 %v657
        %659 = vmatprep.subr.mxu0 0.0
        %v660 = vand.u32 %v354, 4294901760
        %v661 = vsub.f32 %v354, %v660
        %662 = vmatpush1.msra.mxu0 %v661
        %663 = vmatprep.subr.mxu0 0.0
        %v664 = vand.u32 %v353, 4294901760
        %v665 = vsub.f32 %v353, %v664
        %666 = vmatpush1.msra.mxu0 %v665
        %667 = vmatprep.subr.mxu0 0.0
        %v668 = vand.u32 %v352, 4294901760
        %v669 = vsub.f32 %v352, %v668
        %670 = vmatpush1.msra.mxu0 %v669
        %671 = vmatprep.subr.mxu0 0.0
        %v672 = vand.u32 %v351, 4294901760
        %v673 = vsub.f32 %v351, %v672
        %674 = vmatpush1.msra.mxu0 %v673
        %675 = vmatprep.subr.mxu0 0.0
        %v676 = vand.u32 %v350, 4294901760
        %v677 = vsub.f32 %v350, %v676
        %678 = vmatpush1.msra.mxu0 %v677
        %679 = vmatprep.subr.mxu0 0.0
        %v680 = vand.u32 %v349, 4294901760
        %v681 = vsub.f32 %v349, %v680
        %682 = vmatpush1.msra.mxu0 %v681
        %683 = vmatprep.subr.mxu0 0.0
        %v684 = vand.u32 %v348, 4294901760
        %v685 = vsub.f32 %v348, %v684
        %686 = vmatpush1.msra.mxu0 %v685
        %687 = vmatprep.subr.mxu0 0.0
        %v688 = vand.u32 %v347, 4294901760
        %v689 = vsub.f32 %v347, %v688
        %690 = vmatpush1.msra.mxu0 %v689
        %691 = vmatprep.subr.mxu0 0.0
        %692 = vmatpush2.msra.mxu0 0.0
        %693 = vmatprep.subr.mxu0 0.0
        %694 = vmatpush2.msra.mxu0 0.0
        %695 = vmatprep.subr.mxu0 0.0
        %696 = vmatpush2.msra.mxu0 0.0
        %697 = vmatprep.subr.mxu0 0.0
        %698 = vmatpush2.msra.mxu0 0.0
        %699 = vmatprep.subr.mxu0 0.0
        %700 = vmatpush2.msra.mxu0 0.0
        %701 = vmatprep.subr.mxu0 0.0
        %702 = vmatpush2.msra.mxu0 0.0
        %703 = vmatprep.subr.mxu0 0.0
        %704 = vmatpush2.msra.mxu0 0.0
        %705 = vmatprep.subr.mxu0 0.0
        %706 = vmatpush2.msra.mxu0 0.0
        %707 = vmatprep.subr.mxu0 0.0
        %708 = vmatpush2.msra.mxu0 0.0
        %709 = vmatprep.subr.mxu0 0.0
        %710 = vmatpush2.msra.mxu0 0.0
        %711 = vmatprep.subr.mxu0 0.0
        %712 = vmatpush2.msra.mxu0 0.0
        %713 = vmatprep.subr.mxu0 0.0
        %714 = vmatpush2.msra.mxu0 0.0
        %715 = vmatprep.subr.mxu0 0.0
        %716 = vmatpush2.msra.mxu0 0.0
        %717 = vmatprep.subr.mxu0 0.0
        %718 = vmatpush2.msra.mxu0 0.0
        %719 = vmatprep.subr.mxu0 0.0
        %720 = vmatpush2.msra.mxu0 0.0
        %721 = vmatprep.subr.mxu0 0.0
        %722 = vmatpush2.msra.mxu0 0.0
        %723 = vmatprep.mubr.f32.mxu0 0.0
        %v724 = vand.u32 %v345, 4294901760
        %v725 = vsub.f32 %v345, %v724
        %726 = vmatmul.mubr.f32.gmra.mxu0 %v725
        %v727 = vpop.f32.mrf.mxu0
        %v728 = vadd.f32 %v618, %v727
        %v729 = vpop.f32.mrf.mxu0
        %730 = vmatprep.mubr.f32.mxu0 0.0
        %v731 = vand.u32 %v346, 4294901760
        %v732 = vsub.f32 %v346, %v731
        %733 = vmatmul.mubr.f32.gmra.mxu0 %v732
        %v734 = vpop.f32.mrf.mxu0
        %v735 = vadd.f32 %v624, %v734
        %v736 = vpop.f32.mrf.mxu0
        %737 = vdwg.mxu0
        %738 = vmatprep.subr.mxu0 0.0
        %v739 = vand.u32 %v362, 4294901760
        %740 = vmatpush1.msra.mxu0 %v739
        %741 = vmatprep.subr.mxu0 0.0
        %v742 = vand.u32 %v361, 4294901760
        %743 = vmatpush1.msra.mxu0 %v742
        %744 = vmatprep.subr.mxu0 0.0
        %v745 = vand.u32 %v360, 4294901760
        %746 = vmatpush1.msra.mxu0 %v745
        %747 = vmatprep.subr.mxu0 0.0
        %v748 = vand.u32 %v359, 4294901760
        %749 = vmatpush1.msra.mxu0 %v748
        %750 = vmatprep.subr.mxu0 0.0
        %v751 = vand.u32 %v358, 4294901760
        %752 = vmatpush1.msra.mxu0 %v751
        %753 = vmatprep.subr.mxu0 0.0
        %v754 = vand.u32 %v357, 4294901760
        %755 = vmatpush1.msra.mxu0 %v754
        %756 = vmatprep.subr.mxu0 0.0
        %v757 = vand.u32 %v356, 4294901760
        %758 = vmatpush1.msra.mxu0 %v757
        %759 = vmatprep.subr.mxu0 0.0
        %v760 = vand.u32 %v355, 4294901760
        %761 = vmatpush1.msra.mxu0 %v760
        %762 = vmatprep.subr.mxu0 0.0
        %v763 = vand.u32 %v354, 4294901760
        %764 = vmatpush1.msra.mxu0 %v763
        %765 = vmatprep.subr.mxu0 0.0
        %v766 = vand.u32 %v353, 4294901760
        %767 = vmatpush1.msra.mxu0 %v766
        %768 = vmatprep.subr.mxu0 0.0
        %v769 = vand.u32 %v352, 4294901760
        %770 = vmatpush1.msra.mxu0 %v769
        %771 = vmatprep.subr.mxu0 0.0
        %v772 = vand.u32 %v351, 4294901760
        %773 = vmatpush1.msra.mxu0 %v772
        %774 = vmatprep.subr.mxu0 0.0
        %v775 = vand.u32 %v350, 4294901760
        %776 = vmatpush1.msra.mxu0 %v775
        %777 = vmatprep.subr.mxu0 0.0
        %v778 = vand.u32 %v349, 4294901760
        %779 = vmatpush1.msra.mxu0 %v778
        %780 = vmatprep.subr.mxu0 0.0
        %v781 = vand.u32 %v348, 4294901760
        %782 = vmatpush1.msra.mxu0 %v781
        %783 = vmatprep.subr.mxu0 0.0
        %v784 = vand.u32 %v347, 4294901760
        %785 = vmatpush1.msra.mxu0 %v784
        %786 = vmatprep.subr.mxu0 0.0
        %787 = vmatpush2.msra.mxu0 0.0
        %788 = vmatprep.subr.mxu0 0.0
        %789 = vmatpush2.msra.mxu0 0.0
        %790 = vmatprep.subr.mxu0 0.0
        %791 = vmatpush2.msra.mxu0 0.0
        %792 = vmatprep.subr.mxu0 0.0
        %793 = vmatpush2.msra.mxu0 0.0
        %794 = vmatprep.subr.mxu0 0.0
        %795 = vmatpush2.msra.mxu0 0.0
        %796 = vmatprep.subr.mxu0 0.0
        %797 = vmatpush2.msra.mxu0 0.0
        %798 = vmatprep.subr.mxu0 0.0
        %799 = vmatpush2.msra.mxu0 0.0
        %800 = vmatprep.subr.mxu0 0.0
        %801 = vmatpush2.msra.mxu0 0.0
        %802 = vmatprep.subr.mxu0 0.0
        %803 = vmatpush2.msra.mxu0 0.0
        %804 = vmatprep.subr.mxu0 0.0
        %805 = vmatpush2.msra.mxu0 0.0
        %806 = vmatprep.subr.mxu0 0.0
        %807 = vmatpush2.msra.mxu0 0.0
        %808 = vmatprep.subr.mxu0 0.0
        %809 = vmatpush2.msra.mxu0 0.0
        %810 = vmatprep.subr.mxu0 0.0
        %811 = vmatpush2.msra.mxu0 0.0
        %812 = vmatprep.subr.mxu0 0.0
        %813 = vmatpush2.msra.mxu0 0.0
        %814 = vmatprep.subr.mxu0 0.0
        %815 = vmatpush2.msra.mxu0 0.0
        %816 = vmatprep.subr.mxu0 0.0
        %817 = vmatpush2.msra.mxu0 0.0
        %818 = vmatprep.mubr.f32.mxu0 0.0
        %v819 = vand.u32 %v345, 4294901760
        %v820 = vsub.f32 %v345, %v819
        %v821 = vand.u32 %v820, 4294901760
        %822 = vmatmul.mubr.f32.gmra.mxu0 %v821
        %v823 = vpop.f32.mrf.mxu0
        %v824 = vadd.f32 %v728, %v823
        %v825 = vpop.f32.mrf.mxu0
        %826 = vmatprep.mubr.f32.mxu0 0.0
        %v827 = vand.u32 %v346, 4294901760
        %v828 = vsub.f32 %v346, %v827
        %v829 = vand.u32 %v828, 4294901760
        %830 = vmatmul.mubr.f32.gmra.mxu0 %v829
        %v831 = vpop.f32.mrf.mxu0
        %v832 = vadd.f32 %v735, %v831
        %v833 = vpop.f32.mrf.mxu0
        %834 = vdwg.mxu0
        %835 = vmatprep.subr.mxu0 0.0
        %v836 = vand.u32 %v362, 4294901760
        %v837 = vsub.f32 %v362, %v836
        %v838 = vand.u32 %v837, 4294901760
        %839 = vmatpush1.msra.mxu0 %v838
        %840 = vmatprep.subr.mxu0 0.0
        %v841 = vand.u32 %v361, 4294901760
        %v842 = vsub.f32 %v361, %v841
        %v843 = vand.u32 %v842, 4294901760
        %844 = vmatpush1.msra.mxu0 %v843
        %845 = vmatprep.subr.mxu0 0.0
        %v846 = vand.u32 %v360, 4294901760
        %v847 = vsub.f32 %v360, %v846
        %v848 = vand.u32 %v847, 4294901760
        %849 = vmatpush1.msra.mxu0 %v848
        %850 = vmatprep.subr.mxu0 0.0
        %v851 = vand.u32 %v359, 4294901760
        %v852 = vsub.f32 %v359, %v851
        %v853 = vand.u32 %v852, 4294901760
        %854 = vmatpush1.msra.mxu0 %v853
        %855 = vmatprep.subr.mxu0 0.0
        %v856 = vand.u32 %v358, 4294901760
        %v857 = vsub.f32 %v358, %v856
        %v858 = vand.u32 %v857, 4294901760
        %859 = vmatpush1.msra.mxu0 %v858
        %860 = vmatprep.subr.mxu0 0.0
        %v861 = vand.u32 %v357, 4294901760
        %v862 = vsub.f32 %v357, %v861
        %v863 = vand.u32 %v862, 4294901760
        %864 = vmatpush1.msra.mxu0 %v863
        %865 = vmatprep.subr.mxu0 0.0
        %v866 = vand.u32 %v356, 4294901760
        %v867 = vsub.f32 %v356, %v866
        %v868 = vand.u32 %v867, 4294901760
        %869 = vmatpush1.msra.mxu0 %v868
        %870 = vmatprep.subr.mxu0 0.0
        %v871 = vand.u32 %v355, 4294901760
        %v872 = vsub.f32 %v355, %v871
        %v873 = vand.u32 %v872, 4294901760
        %874 = vmatpush1.msra.mxu0 %v873
        %875 = vmatprep.subr.mxu0 0.0
        %v876 = vand.u32 %v354, 4294901760
        %v877 = vsub.f32 %v354, %v876
        %v878 = vand.u32 %v877, 4294901760
        %879 = vmatpush1.msra.mxu0 %v878
        %880 = vmatprep.subr.mxu0 0.0
        %v881 = vand.u32 %v353, 4294901760
        %v882 = vsub.f32 %v353, %v881
        %v883 = vand.u32 %v882, 4294901760
        %884 = vmatpush1.msra.mxu0 %v883
        %885 = vmatprep.subr.mxu0 0.0
        %v886 = vand.u32 %v352, 4294901760
        %v887 = vsub.f32 %v352, %v886
        %v888 = vand.u32 %v887, 4294901760
        %889 = vmatpush1.msra.mxu0 %v888
        %890 = vmatprep.subr.mxu0 0.0
        %v891 = vand.u32 %v351, 4294901760
        %v892 = vsub.f32 %v351, %v891
        %v893 = vand.u32 %v892, 4294901760
        %894 = vmatpush1.msra.mxu0 %v893
        %895 = vmatprep.subr.mxu0 0.0
        %v896 = vand.u32 %v350, 4294901760
        %v897 = vsub.f32 %v350, %v896
        %v898 = vand.u32 %v897, 4294901760
        %899 = vmatpush1.msra.mxu0 %v898
        %900 = vmatprep.subr.mxu0 0.0
        %v901 = vand.u32 %v349, 4294901760
        %v902 = vsub.f32 %v349, %v901
        %v903 = vand.u32 %v902, 4294901760
        %904 = vmatpush1.msra.mxu0 %v903
        %905 = vmatprep.subr.mxu0 0.0
        %v906 = vand.u32 %v348, 4294901760
        %v907 = vsub.f32 %v348, %v906
        %v908 = vand.u32 %v907, 4294901760
        %909 = vmatpush1.msra.mxu0 %v908
        %910 = vmatprep.subr.mxu0 0.0
        %v911 = vand.u32 %v347, 4294901760
        %v912 = vsub.f32 %v347, %v911
        %v913 = vand.u32 %v912, 4294901760
        %914 = vmatpush1.msra.mxu0 %v913
        %915 = vmatprep.subr.mxu0 0.0
        %916 = vmatpush2.msra.mxu0 0.0
        %917 = vmatprep.subr.mxu0 0.0
        %918 = vmatpush2.msra.mxu0 0.0
        %919 = vmatprep.subr.mxu0 0.0
        %920 = vmatpush2.msra.mxu0 0.0
        %921 = vmatprep.subr.mxu0 0.0
        %922 = vmatpush2.msra.mxu0 0.0
        %923 = vmatprep.subr.mxu0 0.0
        %924 = vmatpush2.msra.mxu0 0.0
        %925 = vmatprep.subr.mxu0 0.0
        %926 = vmatpush2.msra.mxu0 0.0
        %927 = vmatprep.subr.mxu0 0.0
        %928 = vmatpush2.msra.mxu0 0.0
        %929 = vmatprep.subr.mxu0 0.0
        %930 = vmatpush2.msra.mxu0 0.0
        %931 = vmatprep.subr.mxu0 0.0
        %932 = vmatpush2.msra.mxu0 0.0
        %933 = vmatprep.subr.mxu0 0.0
        %934 = vmatpush2.msra.mxu0 0.0
        %935 = vmatprep.subr.mxu0 0.0
        %936 = vmatpush2.msra.mxu0 0.0
        %937 = vmatprep.subr.mxu0 0.0
        %938 = vmatpush2.msra.mxu0 0.0
        %939 = vmatprep.subr.mxu0 0.0
        %940 = vmatpush2.msra.mxu0 0.0
        %941 = vmatprep.subr.mxu0 0.0
        %942 = vmatpush2.msra.mxu0 0.0
        %943 = vmatprep.subr.mxu0 0.0
        %944 = vmatpush2.msra.mxu0 0.0
        %945 = vmatprep.subr.mxu0 0.0
        %946 = vmatpush2.msra.mxu0 0.0
        %947 = vmatprep.mubr.f32.mxu0 0.0
        %v948 = vand.u32 %v345, 4294901760
        %949 = vmatmul.mubr.f32.gmra.mxu0 %v948
        %v950 = vpop.f32.mrf.mxu0
        %v951 = vadd.f32 %v824, %v950
        %v952 = vpop.f32.mrf.mxu0
        %953 = vmatprep.mubr.f32.mxu0 0.0
        %v954 = vand.u32 %v346, 4294901760
        %955 = vmatmul.mubr.f32.gmra.mxu0 %v954
        %v956 = vpop.f32.mrf.mxu0
        %v957 = vadd.f32 %v832, %v956
        %v958 = vpop.f32.mrf.mxu0
        %959 = vdwg.mxu0
        %960 = vmatprep.subr.mxu0 0.0
        %v961 = vand.u32 %v362, 4294901760
        %962 = vmatpush1.msra.mxu0 %v961
        %963 = vmatprep.subr.mxu0 0.0
        %v964 = vand.u32 %v361, 4294901760
        %965 = vmatpush1.msra.mxu0 %v964
        %966 = vmatprep.subr.mxu0 0.0
        %v967 = vand.u32 %v360, 4294901760
        %968 = vmatpush1.msra.mxu0 %v967
        %969 = vmatprep.subr.mxu0 0.0
        %v970 = vand.u32 %v359, 4294901760
        %971 = vmatpush1.msra.mxu0 %v970
        %972 = vmatprep.subr.mxu0 0.0
        %v973 = vand.u32 %v358, 4294901760
        %974 = vmatpush1.msra.mxu0 %v973
        %975 = vmatprep.subr.mxu0 0.0
        %v976 = vand.u32 %v357, 4294901760
        %977 = vmatpush1.msra.mxu0 %v976
        %978 = vmatprep.subr.mxu0 0.0
        %v979 = vand.u32 %v356, 4294901760
        %980 = vmatpush1.msra.mxu0 %v979
        %981 = vmatprep.subr.mxu0 0.0
        %v982 = vand.u32 %v355, 4294901760
        %983 = vmatpush1.msra.mxu0 %v982
        %984 = vmatprep.subr.mxu0 0.0
        %v985 = vand.u32 %v354, 4294901760
        %986 = vmatpush1.msra.mxu0 %v985
        %987 = vmatprep.subr.mxu0 0.0
        %v988 = vand.u32 %v353, 4294901760
        %989 = vmatpush1.msra.mxu0 %v988
        %990 = vmatprep.subr.mxu0 0.0
        %v991 = vand.u32 %v352, 4294901760
        %992 = vmatpush1.msra.mxu0 %v991
        %993 = vmatprep.subr.mxu0 0.0
        %v994 = vand.u32 %v351, 4294901760
        %995 = vmatpush1.msra.mxu0 %v994
        %996 = vmatprep.subr.mxu0 0.0
        %v997 = vand.u32 %v350, 4294901760
        %998 = vmatpush1.msra.mxu0 %v997
        %999 = vmatprep.subr.mxu0 0.0
        %v1000 = vand.u32 %v349, 4294901760
        %1001 = vmatpush1.msra.mxu0 %v1000
        %1002 = vmatprep.subr.mxu0 0.0
        %v1003 = vand.u32 %v348, 4294901760
        %1004 = vmatpush1.msra.mxu0 %v1003
        %1005 = vmatprep.subr.mxu0 0.0
        %v1006 = vand.u32 %v347, 4294901760
        %1007 = vmatpush1.msra.mxu0 %v1006
        %1008 = vmatprep.subr.mxu0 0.0
        %1009 = vmatpush2.msra.mxu0 0.0
        %1010 = vmatprep.subr.mxu0 0.0
        %1011 = vmatpush2.msra.mxu0 0.0
        %1012 = vmatprep.subr.mxu0 0.0
        %1013 = vmatpush2.msra.mxu0 0.0
        %1014 = vmatprep.subr.mxu0 0.0
        %1015 = vmatpush2.msra.mxu0 0.0
        %1016 = vmatprep.subr.mxu0 0.0
        %1017 = vmatpush2.msra.mxu0 0.0
        %1018 = vmatprep.subr.mxu0 0.0
        %1019 = vmatpush2.msra.mxu0 0.0
        %1020 = vmatprep.subr.mxu0 0.0
        %1021 = vmatpush2.msra.mxu0 0.0
        %1022 = vmatprep.subr.mxu0 0.0
        %1023 = vmatpush2.msra.mxu0 0.0
        %1024 = vmatprep.subr.mxu0 0.0
        %1025 = vmatpush2.msra.mxu0 0.0
        %1026 = vmatprep.subr.mxu0 0.0
        %1027 = vmatpush2.msra.mxu0 0.0
        %1028 = vmatprep.subr.mxu0 0.0
        %1029 = vmatpush2.msra.mxu0 0.0
        %1030 = vmatprep.subr.mxu0 0.0
        %1031 = vmatpush2.msra.mxu0 0.0
        %1032 = vmatprep.subr.mxu0 0.0
        %1033 = vmatpush2.msra.mxu0 0.0
        %1034 = vmatprep.subr.mxu0 0.0
        %1035 = vmatpush2.msra.mxu0 0.0
        %1036 = vmatprep.subr.mxu0 0.0
        %1037 = vmatpush2.msra.mxu0 0.0
        %1038 = vmatprep.subr.mxu0 0.0
        %1039 = vmatpush2.msra.mxu0 0.0
        %1040 = vmatprep.mubr.f32.mxu0 0.0
        %v1041 = vand.u32 %v345, 4294901760
        %1042 = vmatmul.mubr.f32.gmra.mxu0 %v1041
        %v1043 = vpop.f32.mrf.mxu0
        %v1044 = vadd.f32 %v951, %v1043
        %v1045 = vpop.f32.mrf.mxu0
        %1046 = vmatprep.mubr.f32.mxu0 0.0
        %v1047 = vand.u32 %v346, 4294901760
        %1048 = vmatmul.mubr.f32.gmra.mxu0 %v1047
        %v1049 = vpop.f32.mrf.mxu0
        %v1050 = vadd.f32 %v957, %v1049
        %v1051 = vpop.f32.mrf.mxu0
        %1052 = vdwg.mxu0
        %v1053 = vmax.f32 %v1044, 0.0
        %v1054 = vmax.f32 %v1050, 0.0
        %v1055 = vld [vmem:[#allocation2] sm:$0xff]
        %v1056 = vld [vmem:[#allocation2 + $0x8] sm:$0xff]
        %v1057 = vld [vmem:[%s294] sm:$0xff]
        %v1058 = vld [vmem:[%s294 + $0x8] sm:$0xff]
        %v1059 = vld [vmem:[%s294 + $0x10] sm:$0xff]
        %v1060 = vld [vmem:[%s294 + $0x18] sm:$0xff]
        %v1061 = vld [vmem:[%s294 + $0x20] sm:$0xff]
        %v1062 = vld [vmem:[%s294 + $0x28] sm:$0xff]
        %v1063 = vld [vmem:[%s294 + $0x30] sm:$0xff]
        %v1064 = vld [vmem:[%s294 + $0x38] sm:$0xff]
        %v1065 = vld [vmem:[%s294 + $0x40] sm:$0xff]
        %v1066 = vld [vmem:[%s294 + $0x48] sm:$0xff]
        %v1067 = vld [vmem:[%s294 + $0x50] sm:$0xff]
        %v1068 = vld [vmem:[%s294 + $0x58] sm:$0xff]
        %v1069 = vld [vmem:[%s294 + $0x60] sm:$0xff]
        %v1070 = vld [vmem:[%s294 + $0x68] sm:$0xff]
        %v1071 = vld [vmem:[%s294 + $0x70] sm:$0xff]
        %v1072 = vld [vmem:[%s294 + $0x78] sm:$0xff]
        %1073 = vmatprep.subr.mxu0 0.0
        %v1074 = vand.u32 %v1072, 4294901760
        %1075 = vmatpush1.msra.mxu0 %v1074
        %1076 = vmatprep.subr.mxu0 0.0
        %v1077 = vand.u32 %v1071, 4294901760
        %1078 = vmatpush1.msra.mxu0 %v1077
        %1079 = vmatprep.subr.mxu0 0.0
        %v1080 = vand.u32 %v1070, 4294901760
        %1081 = vmatpush1.msra.mxu0 %v1080
        %1082 = vmatprep.subr.mxu0 0.0
        %v1083 = vand.u32 %v1069, 4294901760
        %1084 = vmatpush1.msra.mxu0 %v1083
        %1085 = vmatprep.subr.mxu0 0.0
        %v1086 = vand.u32 %v1068, 4294901760
        %1087 = vmatpush1.msra.mxu0 %v1086
        %1088 = vmatprep.subr.mxu0 0.0
        %v1089 = vand.u32 %v1067, 4294901760
        %1090 = vmatpush1.msra.mxu0 %v1089
        %1091 = vmatprep.subr.mxu0 0.0
        %v1092 = vand.u32 %v1066, 4294901760
        %1093 = vmatpush1.msra.mxu0 %v1092
        %1094 = vmatprep.subr.mxu0 0.0
        %v1095 = vand.u32 %v1065, 4294901760
        %1096 = vmatpush1.msra.mxu0 %v1095
        %1097 = vmatprep.subr.mxu0 0.0
        %v1098 = vand.u32 %v1064, 4294901760
        %1099 = vmatpush1.msra.mxu0 %v1098
        %1100 = vmatprep.subr.mxu0 0.0
        %v1101 = vand.u32 %v1063, 4294901760
        %1102 = vmatpush1.msra.mxu0 %v1101
        %1103 = vmatprep.subr.mxu0 0.0
        %v1104 = vand.u32 %v1062, 4294901760
        %1105 = vmatpush1.msra.mxu0 %v1104
        %1106 = vmatprep.subr.mxu0 0.0
        %v1107 = vand.u32 %v1061, 4294901760
        %1108 = vmatpush1.msra.mxu0 %v1107
        %1109 = vmatprep.subr.mxu0 0.0
        %v1110 = vand.u32 %v1060, 4294901760
        %1111 = vmatpush1.msra.mxu0 %v1110
        %1112 = vmatprep.subr.mxu0 0.0
        %v1113 = vand.u32 %v1059, 4294901760
        %1114 = vmatpush1.msra.mxu0 %v1113
        %1115 = vmatprep.subr.mxu0 0.0
        %v1116 = vand.u32 %v1058, 4294901760
        %1117 = vmatpush1.msra.mxu0 %v1116
        %1118 = vmatprep.subr.mxu0 0.0
        %v1119 = vand.u32 %v1057, 4294901760
        %1120 = vmatpush1.msra.mxu0 %v1119
        %1121 = vmatprep.subr.mxu0 0.0
        %1122 = vmatpush2.msra.mxu0 0.0
        %1123 = vmatprep.subr.mxu0 0.0
        %1124 = vmatpush2.msra.mxu0 0.0
        %1125 = vmatprep.subr.mxu0 0.0
        %1126 = vmatpush2.msra.mxu0 0.0
        %1127 = vmatprep.subr.mxu0 0.0
        %1128 = vmatpush2.msra.mxu0 0.0
        %1129 = vmatprep.subr.mxu0 0.0
        %1130 = vmatpush2.msra.mxu0 0.0
        %1131 = vmatprep.subr.mxu0 0.0
        %1132 = vmatpush2.msra.mxu0 0.0
        %1133 = vmatprep.subr.mxu0 0.0
        %1134 = vmatpush2.msra.mxu0 0.0
        %1135 = vmatprep.subr.mxu0 0.0
        %1136 = vmatpush2.msra.mxu0 0.0
        %1137 = vmatprep.subr.mxu0 0.0
        %1138 = vmatpush2.msra.mxu0 0.0
        %1139 = vmatprep.subr.mxu0 0.0
        %1140 = vmatpush2.msra.mxu0 0.0
        %1141 = vmatprep.subr.mxu0 0.0
        %1142 = vmatpush2.msra.mxu0 0.0
        %1143 = vmatprep.subr.mxu0 0.0
        %1144 = vmatpush2.msra.mxu0 0.0
        %1145 = vmatprep.subr.mxu0 0.0
        %1146 = vmatpush2.msra.mxu0 0.0
        %1147 = vmatprep.subr.mxu0 0.0
        %1148 = vmatpush2.msra.mxu0 0.0
        %1149 = vmatprep.subr.mxu0 0.0
        %1150 = vmatpush2.msra.mxu0 0.0
        %1151 = vmatprep.subr.mxu0 0.0
        %1152 = vmatpush2.msra.mxu0 0.0
        %1153 = vmatprep.mubr.f32.mxu0 0.0
        %v1154 = vand.u32 %v1053, 4294901760
        %v1155 = vsub.f32 %v1053, %v1154
        %v1156 = vand.u32 %v1155, 4294901760
        %v1157 = vsub.f32 %v1155, %v1156
        %v1158 = vand.u32 %v1157, 4294901760
        %1159 = vmatmul.mubr.f32.gmra.mxu0 %v1158
        %v1160 = vpop.f32.mrf.mxu0
        %v1161 = vadd.f32 0.0, %v1160
        %v1162 = vpop.f32.mrf.mxu0
        %1163 = vmatprep.mubr.f32.mxu0 0.0
        %v1164 = vand.u32 %v1054, 4294901760
        %v1165 = vsub.f32 %v1054, %v1164
        %v1166 = vand.u32 %v1165, 4294901760
        %v1167 = vsub.f32 %v1165, %v1166
        %v1168 = vand.u32 %v1167, 4294901760
        %1169 = vmatmul.mubr.f32.gmra.mxu0 %v1168
        %v1170 = vpop.f32.mrf.mxu0
        %v1171 = vadd.f32 0.0, %v1170
        %v1172 = vpop.f32.mrf.mxu0
        %1173 = vdwg.mxu0
        %1174 = vmatprep.subr.mxu0 0.0
        %v1175 = vand.u32 %v1072, 4294901760
        %v1176 = vsub.f32 %v1072, %v1175
        %v1177 = vand.u32 %v1176, 4294901760
        %v1178 = vsub.f32 %v1176, %v1177
        %v1179 = vand.u32 %v1178, 4294901760
        %1180 = vmatpush1.msra.mxu0 %v1179
        %1181 = vmatprep.subr.mxu0 0.0
        %v1182 = vand.u32 %v1071, 4294901760
        %v1183 = vsub.f32 %v1071, %v1182
        %v1184 = vand.u32 %v1183, 4294901760
        %v1185 = vsub.f32 %v1183, %v1184
        %v1186 = vand.u32 %v1185, 4294901760
        %1187 = vmatpush1.msra.mxu0 %v1186
        %1188 = vmatprep.subr.mxu0 0.0
        %v1189 = vand.u32 %v1070, 4294901760
        %v1190 = vsub.f32 %v1070, %v1189
        %v1191 = vand.u32 %v1190, 4294901760
        %v1192 = vsub.f32 %v1190, %v1191
        %v1193 = vand.u32 %v1192, 4294901760
        %1194 = vmatpush1.msra.mxu0 %v1193
        %1195 = vmatprep.subr.mxu0 0.0
        %v1196 = vand.u32 %v1069, 4294901760
        %v1197 = vsub.f32 %v1069, %v1196
        %v1198 = vand.u32 %v1197, 4294901760
        %v1199 = vsub.f32 %v1197, %v1198
        %v1200 = vand.u32 %v1199, 4294901760
        %1201 = vmatpush1.msra.mxu0 %v1200
        %1202 = vmatprep.subr.mxu0 0.0
        %v1203 = vand.u32 %v1068, 4294901760
        %v1204 = vsub.f32 %v1068, %v1203
        %v1205 = vand.u32 %v1204, 4294901760
        %v1206 = vsub.f32 %v1204, %v1205
        %v1207 = vand.u32 %v1206, 4294901760
        %1208 = vmatpush1.msra.mxu0 %v1207
        %1209 = vmatprep.subr.mxu0 0.0
        %v1210 = vand.u32 %v1067, 4294901760
        %v1211 = vsub.f32 %v1067, %v1210
        %v1212 = vand.u32 %v1211, 4294901760
        %v1213 = vsub.f32 %v1211, %v1212
        %v1214 = vand.u32 %v1213, 4294901760
        %1215 = vmatpush1.msra.mxu0 %v1214
        %1216 = vmatprep.subr.mxu0 0.0
        %v1217 = vand.u32 %v1066, 4294901760
        %v1218 = vsub.f32 %v1066, %v1217
        %v1219 = vand.u32 %v1218, 4294901760
        %v1220 = vsub.f32 %v1218, %v1219
        %v1221 = vand.u32 %v1220, 4294901760
        %1222 = vmatpush1.msra.mxu0 %v1221
        %1223 = vmatprep.subr.mxu0 0.0
        %v1224 = vand.u32 %v1065, 4294901760
        %v1225 = vsub.f32 %v1065, %v1224
        %v1226 = vand.u32 %v1225, 4294901760
        %v1227 = vsub.f32 %v1225, %v1226
        %v1228 = vand.u32 %v1227, 4294901760
        %1229 = vmatpush1.msra.mxu0 %v1228
        %1230 = vmatprep.subr.mxu0 0.0
        %v1231 = vand.u32 %v1064, 4294901760
        %v1232 = vsub.f32 %v1064, %v1231
        %v1233 = vand.u32 %v1232, 4294901760
        %v1234 = vsub.f32 %v1232, %v1233
        %v1235 = vand.u32 %v1234, 4294901760
        %1236 = vmatpush1.msra.mxu0 %v1235
        %1237 = vmatprep.subr.mxu0 0.0
        %v1238 = vand.u32 %v1063, 4294901760
        %v1239 = vsub.f32 %v1063, %v1238
        %v1240 = vand.u32 %v1239, 4294901760
        %v1241 = vsub.f32 %v1239, %v1240
        %v1242 = vand.u32 %v1241, 4294901760
        %1243 = vmatpush1.msra.mxu0 %v1242
        %1244 = vmatprep.subr.mxu0 0.0
        %v1245 = vand.u32 %v1062, 4294901760
        %v1246 = vsub.f32 %v1062, %v1245
        %v1247 = vand.u32 %v1246, 4294901760
        %v1248 = vsub.f32 %v1246, %v1247
        %v1249 = vand.u32 %v1248, 4294901760
        %1250 = vmatpush1.msra.mxu0 %v1249
        %1251 = vmatprep.subr.mxu0 0.0
        %v1252 = vand.u32 %v1061, 4294901760
        %v1253 = vsub.f32 %v1061, %v1252
        %v1254 = vand.u32 %v1253, 4294901760
        %v1255 = vsub.f32 %v1253, %v1254
        %v1256 = vand.u32 %v1255, 4294901760
        %1257 = vmatpush1.msra.mxu0 %v1256
        %1258 = vmatprep.subr.mxu0 0.0
        %v1259 = vand.u32 %v1060, 4294901760
        %v1260 = vsub.f32 %v1060, %v1259
        %v1261 = vand.u32 %v1260, 4294901760
        %v1262 = vsub.f32 %v1260, %v1261
        %v1263 = vand.u32 %v1262, 4294901760
        %1264 = vmatpush1.msra.mxu0 %v1263
        %1265 = vmatprep.subr.mxu0 0.0
        %v1266 = vand.u32 %v1059, 4294901760
        %v1267 = vsub.f32 %v1059, %v1266
        %v1268 = vand.u32 %v1267, 4294901760
        %v1269 = vsub.f32 %v1267, %v1268
        %v1270 = vand.u32 %v1269, 4294901760
        %1271 = vmatpush1.msra.mxu0 %v1270
        %1272 = vmatprep.subr.mxu0 0.0
        %v1273 = vand.u32 %v1058, 4294901760
        %v1274 = vsub.f32 %v1058, %v1273
        %v1275 = vand.u32 %v1274, 4294901760
        %v1276 = vsub.f32 %v1274, %v1275
        %v1277 = vand.u32 %v1276, 4294901760
        %1278 = vmatpush1.msra.mxu0 %v1277
        %1279 = vmatprep.subr.mxu0 0.0
        %v1280 = vand.u32 %v1057, 4294901760
        %v1281 = vsub.f32 %v1057, %v1280
        %v1282 = vand.u32 %v1281, 4294901760
        %v1283 = vsub.f32 %v1281, %v1282
        %v1284 = vand.u32 %v1283, 4294901760
        %1285 = vmatpush1.msra.mxu0 %v1284
        %1286 = vmatprep.subr.mxu0 0.0
        %1287 = vmatpush2.msra.mxu0 0.0
        %1288 = vmatprep.subr.mxu0 0.0
        %1289 = vmatpush2.msra.mxu0 0.0
        %1290 = vmatprep.subr.mxu0 0.0
        %1291 = vmatpush2.msra.mxu0 0.0
        %1292 = vmatprep.subr.mxu0 0.0
        %1293 = vmatpush2.msra.mxu0 0.0
        %1294 = vmatprep.subr.mxu0 0.0
        %1295 = vmatpush2.msra.mxu0 0.0
        %1296 = vmatprep.subr.mxu0 0.0
        %1297 = vmatpush2.msra.mxu0 0.0
        %1298 = vmatprep.subr.mxu0 0.0
        %1299 = vmatpush2.msra.mxu0 0.0
        %1300 = vmatprep.subr.mxu0 0.0
        %1301 = vmatpush2.msra.mxu0 0.0
        %1302 = vmatprep.subr.mxu0 0.0
        %1303 = vmatpush2.msra.mxu0 0.0
        %1304 = vmatprep.subr.mxu0 0.0
        %1305 = vmatpush2.msra.mxu0 0.0
        %1306 = vmatprep.subr.mxu0 0.0
        %1307 = vmatpush2.msra.mxu0 0.0
        %1308 = vmatprep.subr.mxu0 0.0
        %1309 = vmatpush2.msra.mxu0 0.0
        %1310 = vmatprep.subr.mxu0 0.0
        %1311 = vmatpush2.msra.mxu0 0.0
        %1312 = vmatprep.subr.mxu0 0.0
        %1313 = vmatpush2.msra.mxu0 0.0
        %1314 = vmatprep.subr.mxu0 0.0
        %1315 = vmatpush2.msra.mxu0 0.0
        %1316 = vmatprep.subr.mxu0 0.0
        %1317 = vmatpush2.msra.mxu0 0.0
        %1318 = vmatprep.mubr.f32.mxu0 0.0
        %v1319 = vand.u32 %v1053, 4294901760
        %1320 = vmatmul.mubr.f32.gmra.mxu0 %v1319
        %v1321 = vpop.f32.mrf.mxu0
        %v1322 = vadd.f32 %v1161, %v1321
        %v1323 = vpop.f32.mrf.mxu0
        %1324 = vmatprep.mubr.f32.mxu0 0.0
        %v1325 = vand.u32 %v1054, 4294901760
        %1326 = vmatmul.mubr.f32.gmra.mxu0 %v1325
        %v1327 = vpop.f32.mrf.mxu0
        %v1328 = vadd.f32 %v1171, %v1327
        %v1329 = vpop.f32.mrf.mxu0
        %1330 = vdwg.mxu0
        %1331 = vmatprep.subr.mxu0 0.0
        %v1332 = vand.u32 %v1072, 4294901760
        %v1333 = vsub.f32 %v1072, %v1332
        %1334 = vmatpush1.msra.mxu0 %v1333
        %1335 = vmatprep.subr.mxu0 0.0
        %v1336 = vand.u32 %v1071, 4294901760
        %v1337 = vsub.f32 %v1071, %v1336
        %1338 = vmatpush1.msra.mxu0 %v1337
        %1339 = vmatprep.subr.mxu0 0.0
        %v1340 = vand.u32 %v1070, 4294901760
        %v1341 = vsub.f32 %v1070, %v1340
        %1342 = vmatpush1.msra.mxu0 %v1341
        %1343 = vmatprep.subr.mxu0 0.0
        %v1344 = vand.u32 %v1069, 4294901760
        %v1345 = vsub.f32 %v1069, %v1344
        %1346 = vmatpush1.msra.mxu0 %v1345
        %1347 = vmatprep.subr.mxu0 0.0
        %v1348 = vand.u32 %v1068, 4294901760
        %v1349 = vsub.f32 %v1068, %v1348
        %1350 = vmatpush1.msra.mxu0 %v1349
        %1351 = vmatprep.subr.mxu0 0.0
        %v1352 = vand.u32 %v1067, 4294901760
        %v1353 = vsub.f32 %v1067, %v1352
        %1354 = vmatpush1.msra.mxu0 %v1353
        %1355 = vmatprep.subr.mxu0 0.0
        %v1356 = vand.u32 %v1066, 4294901760
        %v1357 = vsub.f32 %v1066, %v1356
        %1358 = vmatpush1.msra.mxu0 %v1357
        %1359 = vmatprep.subr.mxu0 0.0
        %v1360 = vand.u32 %v1065, 4294901760
        %v1361 = vsub.f32 %v1065, %v1360
        %1362 = vmatpush1.msra.mxu0 %v1361
        %1363 = vmatprep.subr.mxu0 0.0
        %v1364 = vand.u32 %v1064, 4294901760
        %v1365 = vsub.f32 %v1064, %v1364
        %1366 = vmatpush1.msra.mxu0 %v1365
        %1367 = vmatprep.subr.mxu0 0.0
        %v1368 = vand.u32 %v1063, 4294901760
        %v1369 = vsub.f32 %v1063, %v1368
        %1370 = vmatpush1.msra.mxu0 %v1369
        %1371 = vmatprep.subr.mxu0 0.0
        %v1372 = vand.u32 %v1062, 4294901760
        %v1373 = vsub.f32 %v1062, %v1372
        %1374 = vmatpush1.msra.mxu0 %v1373
        %1375 = vmatprep.subr.mxu0 0.0
        %v1376 = vand.u32 %v1061, 4294901760
        %v1377 = vsub.f32 %v1061, %v1376
        %1378 = vmatpush1.msra.mxu0 %v1377
        %1379 = vmatprep.subr.mxu0 0.0
        %v1380 = vand.u32 %v1060, 4294901760
        %v1381 = vsub.f32 %v1060, %v1380
        %1382 = vmatpush1.msra.mxu0 %v1381
        %1383 = vmatprep.subr.mxu0 0.0
        %v1384 = vand.u32 %v1059, 4294901760
        %v1385 = vsub.f32 %v1059, %v1384
        %1386 = vmatpush1.msra.mxu0 %v1385
        %1387 = vmatprep.subr.mxu0 0.0
        %v1388 = vand.u32 %v1058, 4294901760
        %v1389 = vsub.f32 %v1058, %v1388
        %1390 = vmatpush1.msra.mxu0 %v1389
        %1391 = vmatprep.subr.mxu0 0.0
        %v1392 = vand.u32 %v1057, 4294901760
        %v1393 = vsub.f32 %v1057, %v1392
        %1394 = vmatpush1.msra.mxu0 %v1393
        %1395 = vmatprep.subr.mxu0 0.0
        %1396 = vmatpush2.msra.mxu0 0.0
        %1397 = vmatprep.subr.mxu0 0.0
        %1398 = vmatpush2.msra.mxu0 0.0
        %1399 = vmatprep.subr.mxu0 0.0
        %1400 = vmatpush2.msra.mxu0 0.0
        %1401 = vmatprep.subr.mxu0 0.0
        %1402 = vmatpush2.msra.mxu0 0.0
        %1403 = vmatprep.subr.mxu0 0.0
        %1404 = vmatpush2.msra.mxu0 0.0
        %1405 = vmatprep.subr.mxu0 0.0
        %1406 = vmatpush2.msra.mxu0 0.0
        %1407 = vmatprep.subr.mxu0 0.0
        %1408 = vmatpush2.msra.mxu0 0.0
        %1409 = vmatprep.subr.mxu0 0.0
        %1410 = vmatpush2.msra.mxu0 0.0
        %1411 = vmatprep.subr.mxu0 0.0
        %1412 = vmatpush2.msra.mxu0 0.0
        %1413 = vmatprep.subr.mxu0 0.0
        %1414 = vmatpush2.msra.mxu0 0.0
        %1415 = vmatprep.subr.mxu0 0.0
        %1416 = vmatpush2.msra.mxu0 0.0
        %1417 = vmatprep.subr.mxu0 0.0
        %1418 = vmatpush2.msra.mxu0 0.0
        %1419 = vmatprep.subr.mxu0 0.0
        %1420 = vmatpush2.msra.mxu0 0.0
        %1421 = vmatprep.subr.mxu0 0.0
        %1422 = vmatpush2.msra.mxu0 0.0
        %1423 = vmatprep.subr.mxu0 0.0
        %1424 = vmatpush2.msra.mxu0 0.0
        %1425 = vmatprep.subr.mxu0 0.0
        %1426 = vmatpush2.msra.mxu0 0.0
        %1427 = vmatprep.mubr.f32.mxu0 0.0
        %v1428 = vand.u32 %v1053, 4294901760
        %v1429 = vsub.f32 %v1053, %v1428
        %1430 = vmatmul.mubr.f32.gmra.mxu0 %v1429
        %v1431 = vpop.f32.mrf.mxu0
        %v1432 = vadd.f32 %v1322, %v1431
        %v1433 = vpop.f32.mrf.mxu0
        %1434 = vmatprep.mubr.f32.mxu0 0.0
        %v1435 = vand.u32 %v1054, 4294901760
        %v1436 = vsub.f32 %v1054, %v1435
        %1437 = vmatmul.mubr.f32.gmra.mxu0 %v1436
        %v1438 = vpop.f32.mrf.mxu0
        %v1439 = vadd.f32 %v1328, %v1438
        %v1440 = vpop.f32.mrf.mxu0
        %1441 = vdwg.mxu0
        %1442 = vmatprep.subr.mxu0 0.0
        %v1443 = vand.u32 %v1072, 4294901760
        %1444 = vmatpush1.msra.mxu0 %v1443
        %1445 = vmatprep.subr.mxu0 0.0
        %v1446 = vand.u32 %v1071, 4294901760
        %1447 = vmatpush1.msra.mxu0 %v1446
        %1448 = vmatprep.subr.mxu0 0.0
        %v1449 = vand.u32 %v1070, 4294901760
        %1450 = vmatpush1.msra.mxu0 %v1449
        %1451 = vmatprep.subr.mxu0 0.0
        %v1452 = vand.u32 %v1069, 4294901760
        %1453 = vmatpush1.msra.mxu0 %v1452
        %1454 = vmatprep.subr.mxu0 0.0
        %v1455 = vand.u32 %v1068, 4294901760
        %1456 = vmatpush1.msra.mxu0 %v1455
        %1457 = vmatprep.subr.mxu0 0.0
        %v1458 = vand.u32 %v1067, 4294901760
        %1459 = vmatpush1.msra.mxu0 %v1458
        %1460 = vmatprep.subr.mxu0 0.0
        %v1461 = vand.u32 %v1066, 4294901760
        %1462 = vmatpush1.msra.mxu0 %v1461
        %1463 = vmatprep.subr.mxu0 0.0
        %v1464 = vand.u32 %v1065, 4294901760
        %1465 = vmatpush1.msra.mxu0 %v1464
        %1466 = vmatprep.subr.mxu0 0.0
        %v1467 = vand.u32 %v1064, 4294901760
        %1468 = vmatpush1.msra.mxu0 %v1467
        %1469 = vmatprep.subr.mxu0 0.0
        %v1470 = vand.u32 %v1063, 4294901760
        %1471 = vmatpush1.msra.mxu0 %v1470
        %1472 = vmatprep.subr.mxu0 0.0
        %v1473 = vand.u32 %v1062, 4294901760
        %1474 = vmatpush1.msra.mxu0 %v1473
        %1475 = vmatprep.subr.mxu0 0.0
        %v1476 = vand.u32 %v1061, 4294901760
        %1477 = vmatpush1.msra.mxu0 %v1476
        %1478 = vmatprep.subr.mxu0 0.0
        %v1479 = vand.u32 %v1060, 4294901760
        %1480 = vmatpush1.msra.mxu0 %v1479
        %1481 = vmatprep.subr.mxu0 0.0
        %v1482 = vand.u32 %v1059, 4294901760
        %1483 = vmatpush1.msra.mxu0 %v1482
        %1484 = vmatprep.subr.mxu0 0.0
        %v1485 = vand.u32 %v1058, 4294901760
        %1486 = vmatpush1.msra.mxu0 %v1485
        %1487 = vmatprep.subr.mxu0 0.0
        %v1488 = vand.u32 %v1057, 4294901760
        %1489 = vmatpush1.msra.mxu0 %v1488
        %1490 = vmatprep.subr.mxu0 0.0
        %1491 = vmatpush2.msra.mxu0 0.0
        %1492 = vmatprep.subr.mxu0 0.0
        %1493 = vmatpush2.msra.mxu0 0.0
        %1494 = vmatprep.subr.mxu0 0.0
        %1495 = vmatpush2.msra.mxu0 0.0
        %1496 = vmatprep.subr.mxu0 0.0
        %1497 = vmatpush2.msra.mxu0 0.0
        %1498 = vmatprep.subr.mxu0 0.0
        %1499 = vmatpush2.msra.mxu0 0.0
        %1500 = vmatprep.subr.mxu0 0.0
        %1501 = vmatpush2.msra.mxu0 0.0
        %1502 = vmatprep.subr.mxu0 0.0
        %1503 = vmatpush2.msra.mxu0 0.0
        %1504 = vmatprep.subr.mxu0 0.0
        %1505 = vmatpush2.msra.mxu0 0.0
        %1506 = vmatprep.subr.mxu0 0.0
        %1507 = vmatpush2.msra.mxu0 0.0
        %1508 = vmatprep.subr.mxu0 0.0
        %1509 = vmatpush2.msra.mxu0 0.0
        %1510 = vmatprep.subr.mxu0 0.0
        %1511 = vmatpush2.msra.mxu0 0.0
        %1512 = vmatprep.subr.mxu0 0.0
        %1513 = vmatpush2.msra.mxu0 0.0
        %1514 = vmatprep.subr.mxu0 0.0
        %1515 = vmatpush2.msra.mxu0 0.0
        %1516 = vmatprep.subr.mxu0 0.0
        %1517 = vmatpush2.msra.mxu0 0.0
        %1518 = vmatprep.subr.mxu0 0.0
        %1519 = vmatpush2.msra.mxu0 0.0
        %1520 = vmatprep.subr.mxu0 0.0
        %1521 = vmatpush2.msra.mxu0 0.0
        %1522 = vmatprep.mubr.f32.mxu0 0.0
        %v1523 = vand.u32 %v1053, 4294901760
        %v1524 = vsub.f32 %v1053, %v1523
        %v1525 = vand.u32 %v1524, 4294901760
        %1526 = vmatmul.mubr.f32.gmra.mxu0 %v1525
        %v1527 = vpop.f32.mrf.mxu0
        %v1528 = vadd.f32 %v1432, %v1527
        %v1529 = vpop.f32.mrf.mxu0
        %1530 = vmatprep.mubr.f32.mxu0 0.0
        %v1531 = vand.u32 %v1054, 4294901760
        %v1532 = vsub.f32 %v1054, %v1531
        %v1533 = vand.u32 %v1532, 4294901760
        %1534 = vmatmul.mubr.f32.gmra.mxu0 %v1533
        %v1535 = vpop.f32.mrf.mxu0
        %v1536 = vadd.f32 %v1439, %v1535
        %v1537 = vpop.f32.mrf.mxu0
        %1538 = vdwg.mxu0
        %1539 = vmatprep.subr.mxu0 0.0
        %v1540 = vand.u32 %v1072, 4294901760
        %v1541 = vsub.f32 %v1072, %v1540
        %v1542 = vand.u32 %v1541, 4294901760
        %1543 = vmatpush1.msra.mxu0 %v1542
        %1544 = vmatprep.subr.mxu0 0.0
        %v1545 = vand.u32 %v1071, 4294901760
        %v1546 = vsub.f32 %v1071, %v1545
        %v1547 = vand.u32 %v1546, 4294901760
        %1548 = vmatpush1.msra.mxu0 %v1547
        %1549 = vmatprep.subr.mxu0 0.0
        %v1550 = vand.u32 %v1070, 4294901760
        %v1551 = vsub.f32 %v1070, %v1550
        %v1552 = vand.u32 %v1551, 4294901760
        %1553 = vmatpush1.msra.mxu0 %v1552
        %1554 = vmatprep.subr.mxu0 0.0
        %v1555 = vand.u32 %v1069, 4294901760
        %v1556 = vsub.f32 %v1069, %v1555
        %v1557 = vand.u32 %v1556, 4294901760
        %1558 = vmatpush1.msra.mxu0 %v1557
        %1559 = vmatprep.subr.mxu0 0.0
        %v1560 = vand.u32 %v1068, 4294901760
        %v1561 = vsub.f32 %v1068, %v1560
        %v1562 = vand.u32 %v1561, 4294901760
        %1563 = vmatpush1.msra.mxu0 %v1562
        %1564 = vmatprep.subr.mxu0 0.0
        %v1565 = vand.u32 %v1067, 4294901760
        %v1566 = vsub.f32 %v1067, %v1565
        %v1567 = vand.u32 %v1566, 4294901760
        %1568 = vmatpush1.msra.mxu0 %v1567
        %1569 = vmatprep.subr.mxu0 0.0
        %v1570 = vand.u32 %v1066, 4294901760
        %v1571 = vsub.f32 %v1066, %v1570
        %v1572 = vand.u32 %v1571, 4294901760
        %1573 = vmatpush1.msra.mxu0 %v1572
        %1574 = vmatprep.subr.mxu0 0.0
        %v1575 = vand.u32 %v1065, 4294901760
        %v1576 = vsub.f32 %v1065, %v1575
        %v1577 = vand.u32 %v1576, 4294901760
        %1578 = vmatpush1.msra.mxu0 %v1577
        %1579 = vmatprep.subr.mxu0 0.0
        %v1580 = vand.u32 %v1064, 4294901760
        %v1581 = vsub.f32 %v1064, %v1580
        %v1582 = vand.u32 %v1581, 4294901760
        %1583 = vmatpush1.msra.mxu0 %v1582
        %1584 = vmatprep.subr.mxu0 0.0
        %v1585 = vand.u32 %v1063, 4294901760
        %v1586 = vsub.f32 %v1063, %v1585
        %v1587 = vand.u32 %v1586, 4294901760
        %1588 = vmatpush1.msra.mxu0 %v1587
        %1589 = vmatprep.subr.mxu0 0.0
        %v1590 = vand.u32 %v1062, 4294901760
        %v1591 = vsub.f32 %v1062, %v1590
        %v1592 = vand.u32 %v1591, 4294901760
        %1593 = vmatpush1.msra.mxu0 %v1592
        %1594 = vmatprep.subr.mxu0 0.0
        %v1595 = vand.u32 %v1061, 4294901760
        %v1596 = vsub.f32 %v1061, %v1595
        %v1597 = vand.u32 %v1596, 4294901760
        %1598 = vmatpush1.msra.mxu0 %v1597
        %1599 = vmatprep.subr.mxu0 0.0
        %v1600 = vand.u32 %v1060, 4294901760
        %v1601 = vsub.f32 %v1060, %v1600
        %v1602 = vand.u32 %v1601, 4294901760
        %1603 = vmatpush1.msra.mxu0 %v1602
        %1604 = vmatprep.subr.mxu0 0.0
        %v1605 = vand.u32 %v1059, 4294901760
        %v1606 = vsub.f32 %v1059, %v1605
        %v1607 = vand.u32 %v1606, 4294901760
        %1608 = vmatpush1.msra.mxu0 %v1607
        %1609 = vmatprep.subr.mxu0 0.0
        %v1610 = vand.u32 %v1058, 4294901760
        %v1611 = vsub.f32 %v1058, %v1610
        %v1612 = vand.u32 %v1611, 4294901760
        %1613 = vmatpush1.msra.mxu0 %v1612
        %1614 = vmatprep.subr.mxu0 0.0
        %v1615 = vand.u32 %v1057, 4294901760
        %v1616 = vsub.f32 %v1057, %v1615
        %v1617 = vand.u32 %v1616, 4294901760
        %1618 = vmatpush1.msra.mxu0 %v1617
        %1619 = vmatprep.subr.mxu0 0.0
        %1620 = vmatpush2.msra.mxu0 0.0
        %1621 = vmatprep.subr.mxu0 0.0
        %1622 = vmatpush2.msra.mxu0 0.0
        %1623 = vmatprep.subr.mxu0 0.0
        %1624 = vmatpush2.msra.mxu0 0.0
        %1625 = vmatprep.subr.mxu0 0.0
        %1626 = vmatpush2.msra.mxu0 0.0
        %1627 = vmatprep.subr.mxu0 0.0
        %1628 = vmatpush2.msra.mxu0 0.0
        %1629 = vmatprep.subr.mxu0 0.0
        %1630 = vmatpush2.msra.mxu0 0.0
        %1631 = vmatprep.subr.mxu0 0.0
        %1632 = vmatpush2.msra.mxu0 0.0
        %1633 = vmatprep.subr.mxu0 0.0
        %1634 = vmatpush2.msra.mxu0 0.0
        %1635 = vmatprep.subr.mxu0 0.0
        %1636 = vmatpush2.msra.mxu0 0.0
        %1637 = vmatprep.subr.mxu0 0.0
        %1638 = vmatpush2.msra.mxu0 0.0
        %1639 = vmatprep.subr.mxu0 0.0
        %1640 = vmatpush2.msra.mxu0 0.0
        %1641 = vmatprep.subr.mxu0 0.0
        %1642 = vmatpush2.msra.mxu0 0.0
        %1643 = vmatprep.subr.mxu0 0.0
        %1644 = vmatpush2.msra.mxu0 0.0
        %1645 = vmatprep.subr.mxu0 0.0
        %1646 = vmatpush2.msra.mxu0 0.0
        %1647 = vmatprep.subr.mxu0 0.0
        %1648 = vmatpush2.msra.mxu0 0.0
        %1649 = vmatprep.subr.mxu0 0.0
        %1650 = vmatpush2.msra.mxu0 0.0
        %1651 = vmatprep.mubr.f32.mxu0 0.0
        %v1652 = vand.u32 %v1053, 4294901760
        %1653 = vmatmul.mubr.f32.gmra.mxu0 %v1652
        %v1654 = vpop.f32.mrf.mxu0
        %v1655 = vadd.f32 %v1528, %v1654
        %v1656 = vpop.f32.mrf.mxu0
        %1657 = vmatprep.mubr.f32.mxu0 0.0
        %v1658 = vand.u32 %v1054, 4294901760
        %1659 = vmatmul.mubr.f32.gmra.mxu0 %v1658
        %v1660 = vpop.f32.mrf.mxu0
        %v1661 = vadd.f32 %v1536, %v1660
        %v1662 = vpop.f32.mrf.mxu0
        %1663 = vdwg.mxu0
        %1664 = vmatprep.subr.mxu0 0.0
        %v1665 = vand.u32 %v1072, 4294901760
        %1666 = vmatpush1.msra.mxu0 %v1665
        %1667 = vmatprep.subr.mxu0 0.0
        %v1668 = vand.u32 %v1071, 4294901760
        %1669 = vmatpush1.msra.mxu0 %v1668
        %1670 = vmatprep.subr.mxu0 0.0
        %v1671 = vand.u32 %v1070, 4294901760
        %1672 = vmatpush1.msra.mxu0 %v1671
        %1673 = vmatprep.subr.mxu0 0.0
        %v1674 = vand.u32 %v1069, 4294901760
        %1675 = vmatpush1.msra.mxu0 %v1674
        %1676 = vmatprep.subr.mxu0 0.0
        %v1677 = vand.u32 %v1068, 4294901760
        %1678 = vmatpush1.msra.mxu0 %v1677
        %1679 = vmatprep.subr.mxu0 0.0
        %v1680 = vand.u32 %v1067, 4294901760
        %1681 = vmatpush1.msra.mxu0 %v1680
        %1682 = vmatprep.subr.mxu0 0.0
        %v1683 = vand.u32 %v1066, 4294901760
        %1684 = vmatpush1.msra.mxu0 %v1683
        %1685 = vmatprep.subr.mxu0 0.0
        %v1686 = vand.u32 %v1065, 4294901760
        %1687 = vmatpush1.msra.mxu0 %v1686
        %1688 = vmatprep.subr.mxu0 0.0
        %v1689 = vand.u32 %v1064, 4294901760
        %1690 = vmatpush1.msra.mxu0 %v1689
        %1691 = vmatprep.subr.mxu0 0.0
        %v1692 = vand.u32 %v1063, 4294901760
        %1693 = vmatpush1.msra.mxu0 %v1692
        %1694 = vmatprep.subr.mxu0 0.0
        %v1695 = vand.u32 %v1062, 4294901760
        %1696 = vmatpush1.msra.mxu0 %v1695
        %1697 = vmatprep.subr.mxu0 0.0
        %v1698 = vand.u32 %v1061, 4294901760
        %1699 = vmatpush1.msra.mxu0 %v1698
        %1700 = vmatprep.subr.mxu0 0.0
        %v1701 = vand.u32 %v1060, 4294901760
        %1702 = vmatpush1.msra.mxu0 %v1701
        %1703 = vmatprep.subr.mxu0 0.0
        %v1704 = vand.u32 %v1059, 4294901760
        %1705 = vmatpush1.msra.mxu0 %v1704
        %1706 = vmatprep.subr.mxu0 0.0
        %v1707 = vand.u32 %v1058, 4294901760
        %1708 = vmatpush1.msra.mxu0 %v1707
        %1709 = vmatprep.subr.mxu0 0.0
        %v1710 = vand.u32 %v1057, 4294901760
        %1711 = vmatpush1.msra.mxu0 %v1710
        %1712 = vmatprep.subr.mxu0 0.0
        %1713 = vmatpush2.msra.mxu0 0.0
        %1714 = vmatprep.subr.mxu0 0.0
        %1715 = vmatpush2.msra.mxu0 0.0
        %1716 = vmatprep.subr.mxu0 0.0
        %1717 = vmatpush2.msra.mxu0 0.0
        %1718 = vmatprep.subr.mxu0 0.0
        %1719 = vmatpush2.msra.mxu0 0.0
        %1720 = vmatprep.subr.mxu0 0.0
        %1721 = vmatpush2.msra.mxu0 0.0
        %1722 = vmatprep.subr.mxu0 0.0
        %1723 = vmatpush2.msra.mxu0 0.0
        %1724 = vmatprep.subr.mxu0 0.0
        %1725 = vmatpush2.msra.mxu0 0.0
        %1726 = vmatprep.subr.mxu0 0.0
        %1727 = vmatpush2.msra.mxu0 0.0
        %1728 = vmatprep.subr.mxu0 0.0
        %1729 = vmatpush2.msra.mxu0 0.0
        %1730 = vmatprep.subr.mxu0 0.0
        %1731 = vmatpush2.msra.mxu0 0.0
        %1732 = vmatprep.subr.mxu0 0.0
        %1733 = vmatpush2.msra.mxu0 0.0
        %1734 = vmatprep.subr.mxu0 0.0
        %1735 = vmatpush2.msra.mxu0 0.0
        %1736 = vmatprep.subr.mxu0 0.0
        %1737 = vmatpush2.msra.mxu0 0.0
        %1738 = vmatprep.subr.mxu0 0.0
        %1739 = vmatpush2.msra.mxu0 0.0
        %1740 = vmatprep.subr.mxu0 0.0
        %1741 = vmatpush2.msra.mxu0 0.0
        %1742 = vmatprep.subr.mxu0 0.0
        %1743 = vmatpush2.msra.mxu0 0.0
        %1744 = vmatprep.mubr.f32.mxu0 0.0
        %v1745 = vand.u32 %v1053, 4294901760
        %1746 = vmatmul.mubr.f32.gmra.mxu0 %v1745
        %v1747 = vpop.f32.mrf.mxu0
        %v1748 = vadd.f32 %v1655, %v1747
        %v1749 = vpop.f32.mrf.mxu0
        %1750 = vmatprep.mubr.f32.mxu0 0.0
        %v1751 = vand.u32 %v1054, 4294901760
        %1752 = vmatmul.mubr.f32.gmra.mxu0 %v1751
        %v1753 = vpop.f32.mrf.mxu0
        %v1754 = vadd.f32 %v1661, %v1753
        %v1755 = vpop.f32.mrf.mxu0
        %1756 = vdwg.mxu0
        %v1757 = vadd.f32 %v1055, %v1748
        %v1758 = vadd.f32 %v1056, %v1754
        %1759 = vst [vmem:[#allocation2] sm:$0xff] %v1757
        %1760 = vst [vmem:[#allocation2 + $0x8] sm:$0xff] %v1758
        %p1761 = scmp.eq.s32.totalorder %s30, 3
        // Predicated region
        $region57: #{forward.1} parent=39 // pred_check
          %p1762 = pneg %p1761
        $region58: #{forward.1} parent=39 // pred_check_branch
          %1764 = sbr.rel (%p1762) target = $region60
        $region59: #{forward.1} parent=39 // pred_region
          %v1765 = vld [vmem:[#allocation2] sm:$0xff]
          %v1766 = vld [vmem:[#allocation2 + $0x8] sm:$0xff]
          %v1767 = vld [vmem:[%s4] sm:$0x1]
          %v1769 = vlaneseq
          %v1770 = vshrl.u32 %v1769, 7
          %v1771 = vsub.s32 0, %v1770
          %v1772 = vrot.slane %v1767, %v1771
          %v1774 = vadd.f32 %v1765, %v1772
          %v1775 = vadd.f32 %v1766, %v1772
          %1776 = vst [vmem:[%s330] sm:$0xff] %v1774
          %1777 = vst [vmem:[%s330 + $0x8] sm:$0xff] %v1775
        $region60: #{forward.1} parent=39 // pred_fallthru
          _
        %s1778 = sand.u32 %s165, 1
        %s1779 = scalar_lea.sflag [#allocation5], %s1778
        %s1780 = sand.u32 %s165, 1
        %s1781 = smul.addr %s1780, 16
        %s1782 = scalar_lea.vmem [#allocation9], %s1781
        // Predicated region
        $region61: #{forward.1} parent=39 // pred_check
          %p1783 = pneg %p175
        $region62: #{forward.1} parent=39 // pred_check_branch
          %1785 = sbr.rel (%p1783) target = $region64
        $region63: #{forward.1} parent=39 // pred_region
          %s1786 = smul.u32 2, %s29
          %s1788 = ssub.s32 256, 256
          %1789 = vsyncadd %s1779, %s1788
          %s1790 = smul.addr %s1786, 128
          %s1791 = scalar_lea.hbm %s5, %s1790
          %s1792 = sshll.u32 %s1782, 4
          %s1793 = int_to_ptr.vmem [resolvable:$true] %s1792
          %1798 = dma.vmem_to_hbm [thread:$0]  %s1793, 256, %s1791, %s1779, 128, 128, 8
        $region64: #{forward.1} parent=39 // pred_fallthru
          _
      $region40: #{forward.1} parent=5 // pred_fallthru
        _
      %p1799 = scmp.le.s32.totalorder 2, %s20
      // Predicated region
      $region65: #{forward.1} parent=5 // pred_check
        %p1800 = pneg %p1799
      $region66: #{forward.1} parent=5 // pred_check_branch
        %1802 = sbr.rel (%p1800) target = $region68
      $region67: #{forward.1} parent=5 // pred_region
        %s1803 = ssub.s32 %s20, 2
        // Predicated region
        $region69: #{forward.1} parent=67 // pred_check
          %p1804 = pneg %p181
        $region70: #{forward.1} parent=67 // pred_check_branch
          %1806 = sbr.rel (%p1804) target = $region72
        $region71: #{forward.1} parent=67 // pred_region
          %s1807 = sand.u32 %s166, 1
          %s1808 = scalar_lea.sflag [#allocation5], %s1807
          %s1809 = sand.u32 %s166, 1
          %s1810 = smul.addr %s1809, 16
          %s1811 = scalar_lea.vmem [#allocation9], %s1810
          %1812 = dma.done %s1808, 256
        $region72: #{forward.1} parent=67 // pred_fallthru
          _
      $region68: #{forward.1} parent=5 // pred_fallthru
        _
    $region6: #{forward.1} parent=1 // loop_footer
      %s24 = sadd.s32 1, %s20
    $region7: #{forward.1} parent=1 // loop_footer_branch
      %19 = sbr.rel target = $region3
    $region8: #{forward.1} parent=1 // loop_exit
      _
    %1813 = vsyncpa [#allocation4], 1
    %s1814 = scalar_lea.sflag [#allocation4], 1
    %1815 = vsyncpa %s1814, 1
    %1816 = vsyncpa [#allocation7], 1
    %s1817 = scalar_lea.sflag [#allocation7], 1
    %1818 = vsyncpa %s1817, 1
    %1819 = vsyncpa [#allocation5], 1
    %s1820 = scalar_lea.sflag [#allocation5], 1
    %1821 = vsyncpa %s1820, 1

</llo_original>
